<compile_context>
chip_gen: v5e
topology: v5e:2x2
jax: 0.10.0
libtpu: 0.0.40
codegen_flags: <defaults>
</compile_context>

<pallas_src>
import functools

import jax
import jax.numpy as jnp
from jax.experimental import pallas as pl
from jax.experimental.pallas import tpu as pltpu


# --------------------------------------------------------------------------
# Kernel
# --------------------------------------------------------------------------
def fused_kernel(x_ref, res_ref, w1_ref, b1_ref, w2_ref, b2_ref, o_ref):
    # x_ref/res_ref: (tm, D) ; w1: (D, D) bf16 ; b1: (1, D) f32
    # w2: (D, Dout) bf16 (gamma folded in) ; b2: (1, Dout) f32 (beta folded in)

    # First matmul on the MXU: bf16 operands, f32 accumulation.
    x_bf = x_ref[...].astype(jnp.bfloat16)
    h = jnp.dot(x_bf, w1_ref[...], preferred_element_type=jnp.float32)

    # Dropout(p=0.1) in inference mode is the identity.
    # TODO(synk): training-mode dropout (random mask + 1/(1-p) scale) not emulated.

    # Bias + residual add in f32.
    h = h + b1_ref[...] + res_ref[...].astype(jnp.float32)

    # LayerNorm over the last dim, eps=1e-12 (stats in f32).  The elementwise
    # affine (gamma, beta) is folded into W2/b2 by prepare_weights().
    mean = jnp.mean(h, axis=-1, keepdims=True)
    centered = h - mean
    var = jnp.mean(centered * centered, axis=-1, keepdims=True)
    hn = centered * jax.lax.rsqrt(var + 1e-12)

    # Second matmul on the MXU: bf16 operands, f32 accumulation, + bias.
    out = jnp.dot(hn.astype(jnp.bfloat16), w2_ref[...],
                  preferred_element_type=jnp.float32) + b2_ref[...]
    o_ref[...] = out.astype(o_ref.dtype)


# --------------------------------------------------------------------------
# One-time (weight-load-time) preprocessing — call ONCE and reuse the result.
# --------------------------------------------------------------------------
def prepare_weights(w1, b1, gamma, beta, w2, b2, *, weight_dtype=jnp.bfloat16):
    """Fold the LayerNorm affine into the second Linear and cast for the MXU.

      (hn * gamma + beta) @ W2 + b2  ==  hn @ (gamma[:, None] * W2) + (beta @ W2 + b2)

    Returns (w1_bf16, b1_f32[1,D], w2_folded_bf16, b2_folded_f32[1,Dout]).
    """
    gamma = gamma.astype(jnp.float32)
    beta = beta.astype(jnp.float32)
    w2_f32 = w2.astype(jnp.float32)
    b2_f32 = b2.astype(jnp.float32)

    w2_fold = gamma[:, None] * w2_f32
    b2_fold = beta @ w2_f32 + b2_f32

    D = w1.shape[0]
    Dout = w2.shape[1]
    return (w1.astype(weight_dtype),
            b1.reshape(1, D).astype(jnp.float32),
            w2_fold.astype(weight_dtype),
            b2_fold.reshape(1, Dout).astype(jnp.float32))


# --------------------------------------------------------------------------
# Row-tile selection: 3-6 pipeline steps, tile a multiple of 8, prefer an
# exact divisor of the row count so no ragged last block is needed.
# --------------------------------------------------------------------------
def _pick_tm(rows):
    rows8 = -(-rows // 8) * 8
    if rows8 <= 128:
        return rows8                       # tiny: single step
    for cand in (96, 128, 112, 80, 64, 48, 40, 32, 24, 16, 8):
        if rows % cand == 0 and rows // cand >= 2:
            return cand
    # Ragged fallback: Pallas masks the partial last block (rows are
    # independent through LayerNorm; OOB output rows are never written).
    return 96


# --------------------------------------------------------------------------
# Forward wrapper
# --------------------------------------------------------------------------
def fused_forward(x229, x197, params, *, tm=None, out_dtype=jnp.float32):
    """x229, x197: (B, S, D).  params: output of prepare_weights() (reused)."""
    w1_k, b1_2d, w2_k, b2_2d = params
    B, S, D = x229.shape
    Dout = w2_k.shape[1]
    rows = B * S

    x = x229.reshape(rows, D)
    res = x197.reshape(rows, D)

    if tm is None:
        tm = _pick_tm(rows)
    n_tiles = pl.cdiv(rows, tm)

    out_itemsize = jnp.dtype(out_dtype).itemsize
    bytes_accessed = (
        x.size * x.dtype.itemsize + res.size * res.dtype.itemsize
        + w1_k.size * w1_k.dtype.itemsize + w2_k.size * w2_k.dtype.itemsize
        + b1_2d.size * 4 + b2_2d.size * 4
        + rows * Dout * out_itemsize)
    cost = pl.CostEstimate(
        flops=2 * rows * D * (D + Dout),
        transcendentals=rows,              # one rsqrt per row
        bytes_accessed=bytes_accessed,
    )

    out = pl.pallas_call(
        fused_kernel,
        out_shape=jax.ShapeDtypeStruct((rows, Dout), out_dtype),
        grid_spec=pltpu.PrefetchScalarGridSpec(
            num_scalar_prefetch=0,
            grid=(n_tiles,),
            in_specs=[
                pl.BlockSpec((tm, D), lambda i: (i, 0)),      # x tile
                pl.BlockSpec((tm, D), lambda i: (i, 0)),      # residual tile
                pl.BlockSpec((D, D), lambda i: (0, 0)),       # W1 (bf16)
                pl.BlockSpec((1, D), lambda i: (0, 0)),       # b1 (f32)
                pl.BlockSpec((D, Dout), lambda i: (0, 0)),    # W2' (bf16, affine folded)
                pl.BlockSpec((1, Dout), lambda i: (0, 0)),    # b2' (f32)
            ],
            out_specs=pl.BlockSpec((tm, Dout), lambda i: (i, 0)),
        ),
        compiler_params=pltpu.CompilerParams(
            dimension_semantics=("parallel",),
        ),
        cost_estimate=cost,
    )(x, res, w1_k, b1_2d, w2_k, b2_2d)

    return out.reshape(B, S, Dout)


# --------------------------------------------------------------------------
# Pure-JAX reference (mirrors the PyTorch module in eval mode)
# --------------------------------------------------------------------------
def reference_forward(x229, x197, w1, b1, gamma, beta, w2, b2):
    h = jnp.einsum("bsd,de->bse", x229, w1) + b1
    h = h + x197
    mean = jnp.mean(h, axis=-1, keepdims=True)
    var = jnp.mean((h - mean) ** 2, axis=-1, keepdims=True)
    hn = (h - mean) / jnp.sqrt(var + 1e-12)
    hn = hn * gamma + beta
    return jnp.einsum("bsd,de->bse", hn, w2) + b2


if __name__ == "__main__":
    key = jax.random.PRNGKey(0)
    k = jax.random.split(key, 8)

    S, D, Dout = 384, 256, 1024

    x229 = jax.random.normal(k[0], (1, S, D), dtype=jnp.float32)
    x197 = jax.random.normal(k[1], (1, S, D), dtype=jnp.float32)

    # Deterministic parameter init (shapes match nn.Linear / nn.LayerNorm,
    # weights stored as (in, out)). Non-trivial gamma/beta exercise the fold.
    w1 = jax.random.normal(k[2], (D, D), dtype=jnp.float32) * 0.02
    b1 = jax.random.normal(k[3], (D,), dtype=jnp.float32) * 0.02
    gamma = 1.0 + 0.1 * jax.random.normal(k[4], (D,), dtype=jnp.float32)
    beta = 0.05 * jax.random.normal(k[5], (D,), dtype=jnp.float32)
    w2 = jax.random.normal(k[6], (D, Dout), dtype=jnp.float32) * 0.02
    b2 = jax.random.normal(k[7], (Dout,), dtype=jnp.float32) * 0.02

    # One-time weight preprocessing, hoisted out of the per-call path.
    params = jax.block_until_ready(prepare_weights(w1, b1, gamma, beta, w2, b2))

    # Per-call forward only touches x, residual, pre-folded weights, output.
    fwd = jax.jit(functools.partial(fused_forward),
                  static_argnames=("tm", "out_dtype"))
    out = jax.block_until_ready(fwd(x229, x197, params))

    ref = reference_forward(x229, x197, w1, b1, gamma, beta, w2, b2)
    assert out.shape == (1, S, Dout), out.shape
    max_err = float(jnp.max(jnp.abs(out - ref)))
    # bf16 weight storage / bf16 MXU operands => looser tolerance vs. the
    # pure-f32 reference (LayerNorm stats and accumulation are still f32).
    assert jnp.allclose(out, ref, atol=2e-2, rtol=2e-2), max_err

    print("KERNEL_OK")
</pallas_src>

<mosaic_0001>
module attributes {stable_mosaic.version = 11 : i64} {
  func.func @fused_kernel(%arg0: i32, %arg1: memref<96x256xf32, #tpu.memory_space<vmem>>, %arg2: memref<96x256xf32, #tpu.memory_space<vmem>>, %arg3: memref<256x256xbf16, #tpu.memory_space<vmem>>, %arg4: memref<1x256xf32, #tpu.memory_space<vmem>>, %arg5: memref<256x1024xbf16, #tpu.memory_space<vmem>>, %arg6: memref<1x1024xf32, #tpu.memory_space<vmem>>, %arg7: memref<96x1024xf32, #tpu.memory_space<vmem>>) attributes {dimension_semantics = [#tpu.dimension_semantics<parallel>], iteration_bounds = array<i64: 4>, scalar_prefetch = 0 : i64, scratch_operands = 0 : i64, tpu.core_type = #tpu.core_type<tc>, window_params = [{transform_indices = @transform_0, window_bounds = array<i64: 96, 256>}, {transform_indices = @transform_1, window_bounds = array<i64: 96, 256>}, {pipeline_mode = #tpu.pipeline_mode<synchronous>, transform_indices = @transform_2, window_bounds = array<i64: 256, 256>}, {pipeline_mode = #tpu.pipeline_mode<synchronous>, transform_indices = @transform_3, window_bounds = array<i64: 1, 256>}, {pipeline_mode = #tpu.pipeline_mode<synchronous>, transform_indices = @transform_4, window_bounds = array<i64: 256, 1024>}, {pipeline_mode = #tpu.pipeline_mode<synchronous>, transform_indices = @transform_5, window_bounds = array<i64: 1, 1024>}, {transform_indices = @transform_6, window_bounds = array<i64: 96, 1024>}]} {
    %c0 = arith.constant 0 : index
    %c0_0 = arith.constant 0 : index
    %0 = vector.load %arg1[%c0, %c0_0] : memref<96x256xf32, #tpu.memory_space<vmem>>, vector<96x256xf32>
    %1 = arith.truncf %0 : vector<96x256xf32> to vector<96x256xbf16>
    %c0_1 = arith.constant 0 : index
    %c0_2 = arith.constant 0 : index
    %2 = vector.load %arg3[%c0_1, %c0_2] : memref<256x256xbf16, #tpu.memory_space<vmem>>, vector<256x256xbf16>
    %cst = arith.constant dense<0.000000e+00> : vector<96x256xf32>
    %3 = tpu.matmul %1, %2, %cst {dimension_numbers = #tpu.dot_dimension_numbers<[1], [0], [0], [1], [0, 0, 1, 1], [], []>} : vector<96x256xbf16>, vector<256x256xbf16>, vector<96x256xf32> -> vector<96x256xf32>
    %c0_3 = arith.constant 0 : index
    %c0_4 = arith.constant 0 : index
    %4 = vector.load %arg4[%c0_3, %c0_4] : memref<1x256xf32, #tpu.memory_space<vmem>>, vector<1x256xf32>
    %5 = vector.broadcast %4 : vector<1x256xf32> to vector<96x256xf32>
    %6 = arith.addf %3, %5 : vector<96x256xf32>
    %c0_5 = arith.constant 0 : index
    %c0_6 = arith.constant 0 : index
    %7 = vector.load %arg2[%c0_5, %c0_6] : memref<96x256xf32, #tpu.memory_space<vmem>>, vector<96x256xf32>
    %8 = arith.addf %6, %7 : vector<96x256xf32>
    %cst_7 = arith.constant dense<0.000000e+00> : vector<96xf32>
    %9 = vector.multi_reduction <add>, %8, %cst_7 [1] : vector<96x256xf32> to vector<96xf32>
    %10 = vector.shape_cast %9 : vector<96xf32> to vector<96x1xf32>
    %cst_8 = arith.constant 2.560000e+02 : f32
    %11 = vector.broadcast %cst_8 : f32 to vector<96x1xf32>
    %12 = arith.divf %10, %11 : vector<96x1xf32>
    %13 = vector.broadcast %12 : vector<96x1xf32> to vector<96x256xf32>
    %14 = arith.subf %8, %13 : vector<96x256xf32>
    %15 = arith.mulf %14, %14 : vector<96x256xf32>
    %cst_9 = arith.constant dense<0.000000e+00> : vector<96xf32>
    %16 = vector.multi_reduction <add>, %15, %cst_9 [1] : vector<96x256xf32> to vector<96xf32>
    %17 = vector.shape_cast %16 : vector<96xf32> to vector<96x1xf32>
    %cst_10 = arith.constant 2.560000e+02 : f32
    %18 = vector.broadcast %cst_10 : f32 to vector<96x1xf32>
    %19 = arith.divf %17, %18 : vector<96x1xf32>
    %cst_11 = arith.constant 9.99999996E-13 : f32
    %20 = vector.broadcast %cst_11 : f32 to vector<96x1xf32>
    %21 = arith.addf %19, %20 : vector<96x1xf32>
    %22 = math.rsqrt %21 : vector<96x1xf32>
    %23 = vector.broadcast %22 : vector<96x1xf32> to vector<96x256xf32>
    %24 = arith.mulf %14, %23 : vector<96x256xf32>
    %25 = arith.truncf %24 : vector<96x256xf32> to vector<96x256xbf16>
    %c0_12 = arith.constant 0 : index
    %c0_13 = arith.constant 0 : index
    %26 = vector.load %arg5[%c0_12, %c0_13] : memref<256x1024xbf16, #tpu.memory_space<vmem>>, vector<256x1024xbf16>
    %cst_14 = arith.constant dense<0.000000e+00> : vector<96x1024xf32>
    %27 = tpu.matmul %25, %26, %cst_14 {dimension_numbers = #tpu.dot_dimension_numbers<[1], [0], [0], [1], [0, 0, 1, 1], [], []>} : vector<96x256xbf16>, vector<256x1024xbf16>, vector<96x1024xf32> -> vector<96x1024xf32>
    %c0_15 = arith.constant 0 : index
    %c0_16 = arith.constant 0 : index
    %28 = vector.load %arg6[%c0_15, %c0_16] : memref<1x1024xf32, #tpu.memory_space<vmem>>, vector<1x1024xf32>
    %29 = vector.broadcast %28 : vector<1x1024xf32> to vector<96x1024xf32>
    %30 = arith.addf %27, %29 : vector<96x1024xf32>
    %c0_17 = arith.constant 0 : index
    %c0_18 = arith.constant 0 : index
    %31 = vector.load %arg7[%c0_17, %c0_18] : memref<96x1024xf32, #tpu.memory_space<vmem>>, vector<96x1024xf32>
    tpu.vector_store %arg7[%c0_17, %c0_18], %30 {strides = array<i32>} : memref<96x1024xf32, #tpu.memory_space<vmem>>, vector<96x1024xf32>,
    return
  }
  func.func @transform_0(%arg0: i32) -> (i32, i32) {
    %c0_i32 = arith.constant 0 : i32
    %c0_i32_0 = arith.constant 0 : i32
    return %arg0, %c0_i32 : i32, i32
  }
  func.func @transform_1(%arg0: i32) -> (i32, i32) {
    %c0_i32 = arith.constant 0 : i32
    %c0_i32_0 = arith.constant 0 : i32
    return %arg0, %c0_i32 : i32, i32
  }
  func.func @transform_2(%arg0: i32) -> (i32, i32) {
    %c0_i32 = arith.constant 0 : i32
    %c0_i32_0 = arith.constant 0 : i32
    %c0_i32_1 = arith.constant 0 : i32
    return %c0_i32, %c0_i32_0 : i32, i32
  }
  func.func @transform_3(%arg0: i32) -> (i32, i32) {
    %c0_i32 = arith.constant 0 : i32
    %c0_i32_0 = arith.constant 0 : i32
    %c0_i32_1 = arith.constant 0 : i32
    return %c0_i32, %c0_i32_0 : i32, i32
  }
  func.func @transform_4(%arg0: i32) -> (i32, i32) {
    %c0_i32 = arith.constant 0 : i32
    %c0_i32_0 = arith.constant 0 : i32
    %c0_i32_1 = arith.constant 0 : i32
    return %c0_i32, %c0_i32_0 : i32, i32
  }
  func.func @transform_5(%arg0: i32) -> (i32, i32) {
    %c0_i32 = arith.constant 0 : i32
    %c0_i32_0 = arith.constant 0 : i32
    %c0_i32_1 = arith.constant 0 : i32
    return %c0_i32, %c0_i32_0 : i32, i32
  }
  func.func @transform_6(%arg0: i32) -> (i32, i32) {
    %c0_i32 = arith.constant 0 : i32
    %c0_i32_0 = arith.constant 0 : i32
    return %arg0, %c0_i32 : i32, i32
  }
}

</mosaic_0001>

<llo_original>
// kernel: fused_forward.1
$region0: #{fused_forward.1}
  #allocation0 [shape = 'u32[]', space=smem, size = 0x4, offset = 0x4, fixed_abs, tag = 'smem constant byte address 0x4 - core index']
  #allocation1 [shape = 'u32[72,128]{1,0:T(1,128)}', space=vmem, size = 0x9000, scoped, tag = 'internal scratch']
  %s0 = inlined_call_operand.hbm [shape: f32[384,256], index: 0, kind: input, shape index: {}]
  %s1 = inlined_call_operand.hbm [shape: f32[384,256], index: 1, kind: input, shape index: {}]
  %s2 = inlined_call_operand.hbm [shape: bf16[256,256], index: 2, kind: input, shape index: {}]
  %s3 = inlined_call_operand.hbm [shape: f32[1,256], index: 3, kind: input, shape index: {}]
  %s4 = inlined_call_operand.hbm [shape: bf16[256,1024], index: 4, kind: input, shape index: {}]
  %s5 = inlined_call_operand.hbm [shape: f32[1,1024], index: 5, kind: input, shape index: {}]
  %s6 = inlined_call_operand.hbm [shape: f32[384,1024], index: 6, kind: output, shape index: {}]
  %s7 = sld [smem:[#allocation0]]
  $region81: #{fused_forward.1} parent=0
    _
  %s9 = ssub.s32 1, %s7
  %s10 = scalar_select 0, %s9, %s7
  $region1: #{fused_forward.1} parent=0
    #allocation2 [shape = 'u8[196608]{0}', space=vmem, size = 0x30000, scoped, tag = 'input window, operand 0']
    #allocation3 [shape = 's32[2]{0}', space=sflag, size = 0x8, scoped, tag = 'scoped memory for fused_forward.1']
    #allocation4 [shape = 's32[2]{0}', space=sflag, size = 0x8, scoped, tag = 'scoped memory for fused_forward.1']
    #allocation5 [shape = 'u8[196608]{0}', space=vmem, size = 0x30000, scoped, tag = 'input window, operand 1']
    #allocation6 [shape = 's32[2]{0}', space=sflag, size = 0x8, scoped, tag = 'scoped memory for fused_forward.1']
    #allocation7 [shape = 'u8[131072]{0}', space=vmem, size = 0x20000, scoped, tag = 'input window, operand 2, single buffered']
    #allocation8 [shape = 'u8[1024]{0}', space=vmem, size = 0x400, scoped, tag = 'input window, operand 3, single buffered']
    #allocation9 [shape = 's32[1]{0}', space=sflag, size = 0x4, scoped, tag = 'scoped memory for fused_forward.1']
    #allocation10 [shape = 'u8[524288]{0}', space=vmem, size = 0x80000, scoped, tag = 'input window, operand 4, single buffered']
    #allocation11 [shape = 'u8[4096]{0}', space=vmem, size = 0x1000, scoped, tag = 'input window, operand 5, single buffered']
    #allocation12 [shape = 's32[1]{0}', space=sflag, size = 0x4, scoped, tag = 'scoped memory for fused_forward.1']
    #allocation13 [shape = 'u8[786432]{0}', space=vmem, size = 0xc0000, scoped, tag = 'output window, operand 0']
    %11 = vsyncpa [#allocation3], 0
    %s12 = scalar_lea.sflag [#allocation3], 1
    %13 = vsyncpa %s12, 0
    %14 = vsyncpa [#allocation6], 0
    %s15 = scalar_lea.sflag [#allocation6], 1
    %16 = vsyncpa %s15, 0
    %17 = vsyncpa [#allocation9], 0
    %18 = vsyncpa [#allocation12], 0
    %19 = vsyncpa [#allocation4], 0
    %s20 = scalar_lea.sflag [#allocation4], 1
    %21 = vsyncpa %s20, 0
    loop: start=0, step=1, limit=6
    $region2: #{fused_forward.1} parent=1 // loop_pre_header
      _
    $region3: #{fused_forward.1} parent=1 // loop_header
      %s23 = sphi 0, %s27
      %p24 = scmp.ge.s32.totalorder %s23, 6
      %s33 = sphi 0, %s35
      %s36 = sphi 0, %s33
      %s37 = sphi 0, %s36
      %s53 = sphi 0, %s37
      %s59 = sphi 0, %s61
      %s62 = sphi 0, %s59
      %s63 = sphi 0, %s62
      %s79 = sphi 0, %s63
      %s83 = sphi 0, %s83
      %s85 = sphi 0, %s83
      %s86 = sphi 0, %s85
      %s100 = sphi 0, %s86
      %s104 = sphi 0, %s104
      %s106 = sphi 0, %s104
      %s107 = sphi 0, %s106
      %s121 = sphi 0, %s107
      %s125 = sphi 0, %s125
      %s127 = sphi 0, %s125
      %s128 = sphi 0, %s127
      %s142 = sphi 0, %s128
      %s146 = sphi 0, %s146
      %s148 = sphi 0, %s146
      %s149 = sphi 0, %s148
      %s163 = sphi 0, %s149
      %s169 = sphi 0, %s171
      %s172 = sphi 0, %s169
      %s173 = sphi 0, %s172
      %s189 = sphi 0, %s173
    $region4: #{fused_forward.1} parent=1 // loop_header_branch
      %26 = sbr.rel (%p24) target = $region8
    $region5: #{fused_forward.1} parent=1 // loop_body
      %s28 = ssub.s32 %s23, 1
      %s29 = ssub.s32 %s23, 2
      %s30 = sadd.s32 %s23, 1
      %s31 = ssub.s32 %s23, %s30
      %p32 = scmp.eq.s32.totalorder %s31, 0
      %s34 = sadd.s32 %s33, 1
      %s35 = scalar_select %p32, %s33, %s34
      %p38 = pneg %p32
      %p39 = scmp.eq.s32.totalorder %s23, 3
      %p40 = por %p38, %p39
      %p41 = scmp.ne.s32.totalorder %s33, %s36
      %p42 = scmp.eq.s32.totalorder %s23, 0
      %p43 = por %p41, %p42
      %p44 = scmp.ne.s32.totalorder %s33, %s36
      %p45 = scmp.eq.s32.totalorder %s28, 3
      %p46 = por %p44, %p45
      %p47 = scmp.ne.s32.totalorder %s36, %s37
      %p48 = scmp.eq.s32.totalorder %s28, 0
      %p49 = por %p47, %p48
      %p50 = scmp.ne.s32.totalorder %s36, %s37
      %p51 = scmp.eq.s32.totalorder %s29, 3
      %p52 = por %p50, %p51
      %p54 = scmp.ne.s32.totalorder %s37, %s53
      %p55 = scmp.eq.s32.totalorder %s29, 0
      %p56 = por %p54, %p55
      %s57 = ssub.s32 %s23, %s30
      %p58 = scmp.eq.s32.totalorder %s57, 0
      %s60 = sadd.s32 %s59, 1
      %s61 = scalar_select %p58, %s59, %s60
      %p64 = pneg %p58
      %p65 = scmp.eq.s32.totalorder %s23, 3
      %p66 = por %p64, %p65
      %p67 = scmp.ne.s32.totalorder %s59, %s62
      %p68 = scmp.eq.s32.totalorder %s23, 0
      %p69 = por %p67, %p68
      %p70 = scmp.ne.s32.totalorder %s59, %s62
      %p71 = scmp.eq.s32.totalorder %s28, 3
      %p72 = por %p70, %p71
      %p73 = scmp.ne.s32.totalorder %s62, %s63
      %p74 = scmp.eq.s32.totalorder %s28, 0
      %p75 = por %p73, %p74
      %p76 = scmp.ne.s32.totalorder %s62, %s63
      %p77 = scmp.eq.s32.totalorder %s29, 3
      %p78 = por %p76, %p77
      %p80 = scmp.ne.s32.totalorder %s63, %s79
      %p81 = scmp.eq.s32.totalorder %s29, 0
      %p82 = por %p80, %p81
      %s84 = sadd.s32 %s83, 1
      %p87 = scmp.eq.s32.totalorder %s23, 3
      %p88 = scmp.ne.s32.totalorder %s83, %s85
      %p89 = scmp.eq.s32.totalorder %s23, 0
      %p90 = por %p88, %p89
      %p91 = scmp.ne.s32.totalorder %s83, %s85
      %p92 = scmp.eq.s32.totalorder %s28, 3
      %p93 = por %p91, %p92
      %p94 = scmp.ne.s32.totalorder %s85, %s86
      %p95 = scmp.eq.s32.totalorder %s28, 0
      %p96 = por %p94, %p95
      %p97 = scmp.ne.s32.totalorder %s85, %s86
      %p98 = scmp.eq.s32.totalorder %s29, 3
      %p99 = por %p97, %p98
      %p101 = scmp.ne.s32.totalorder %s86, %s100
      %p102 = scmp.eq.s32.totalorder %s29, 0
      %p103 = por %p101, %p102
      %s105 = sadd.s32 %s104, 1
      %p108 = scmp.eq.s32.totalorder %s23, 3
      %p109 = scmp.ne.s32.totalorder %s104, %s106
      %p110 = scmp.eq.s32.totalorder %s23, 0
      %p111 = por %p109, %p110
      %p112 = scmp.ne.s32.totalorder %s104, %s106
      %p113 = scmp.eq.s32.totalorder %s28, 3
      %p114 = por %p112, %p113
      %p115 = scmp.ne.s32.totalorder %s106, %s107
      %p116 = scmp.eq.s32.totalorder %s28, 0
      %p117 = por %p115, %p116
      %p118 = scmp.ne.s32.totalorder %s106, %s107
      %p119 = scmp.eq.s32.totalorder %s29, 3
      %p120 = por %p118, %p119
      %p122 = scmp.ne.s32.totalorder %s107, %s121
      %p123 = scmp.eq.s32.totalorder %s29, 0
      %p124 = por %p122, %p123
      %s126 = sadd.s32 %s125, 1
      %p129 = scmp.eq.s32.totalorder %s23, 3
      %p130 = scmp.ne.s32.totalorder %s125, %s127
      %p131 = scmp.eq.s32.totalorder %s23, 0
      %p132 = por %p130, %p131
      %p133 = scmp.ne.s32.totalorder %s125, %s127
      %p134 = scmp.eq.s32.totalorder %s28, 3
      %p135 = por %p133, %p134
      %p136 = scmp.ne.s32.totalorder %s127, %s128
      %p137 = scmp.eq.s32.totalorder %s28, 0
      %p138 = por %p136, %p137
      %p139 = scmp.ne.s32.totalorder %s127, %s128
      %p140 = scmp.eq.s32.totalorder %s29, 3
      %p141 = por %p139, %p140
      %p143 = scmp.ne.s32.totalorder %s128, %s142
      %p144 = scmp.eq.s32.totalorder %s29, 0
      %p145 = por %p143, %p144
      %s147 = sadd.s32 %s146, 1
      %p150 = scmp.eq.s32.totalorder %s23, 3
      %p151 = scmp.ne.s32.totalorder %s146, %s148
      %p152 = scmp.eq.s32.totalorder %s23, 0
      %p153 = por %p151, %p152
      %p154 = scmp.ne.s32.totalorder %s146, %s148
      %p155 = scmp.eq.s32.totalorder %s28, 3
      %p156 = por %p154, %p155
      %p157 = scmp.ne.s32.totalorder %s148, %s149
      %p158 = scmp.eq.s32.totalorder %s28, 0
      %p159 = por %p157, %p158
      %p160 = scmp.ne.s32.totalorder %s148, %s149
      %p161 = scmp.eq.s32.totalorder %s29, 3
      %p162 = por %p160, %p161
      %p164 = scmp.ne.s32.totalorder %s149, %s163
      %p165 = scmp.eq.s32.totalorder %s29, 0
      %p166 = por %p164, %p165
      %s167 = ssub.s32 %s23, %s30
      %p168 = scmp.eq.s32.totalorder %s167, 0
      %s170 = sadd.s32 %s169, 1
      %s171 = scalar_select %p168, %s169, %s170
      %p174 = pneg %p168
      %p175 = scmp.eq.s32.totalorder %s23, 3
      %p176 = por %p174, %p175
      %p177 = scmp.ne.s32.totalorder %s169, %s172
      %p178 = scmp.eq.s32.totalorder %s23, 0
      %p179 = por %p177, %p178
      %p180 = scmp.ne.s32.totalorder %s169, %s172
      %p181 = scmp.eq.s32.totalorder %s28, 3
      %p182 = por %p180, %p181
      %p183 = scmp.ne.s32.totalorder %s172, %s173
      %p184 = scmp.eq.s32.totalorder %s28, 0
      %p185 = por %p183, %p184
      %p186 = scmp.ne.s32.totalorder %s172, %s173
      %p187 = scmp.eq.s32.totalorder %s29, 3
      %p188 = por %p186, %p187
      %p190 = scmp.ne.s32.totalorder %s173, %s189
      %p191 = scmp.eq.s32.totalorder %s29, 0
      %p192 = por %p190, %p191
      %p193 = scmp.le.s32.totalorder 1, %s23
      %p194 = scmp.lt.s32.totalorder %s23, 5
      %p195 = pnand %p193, %p194
      %p196 = pneg %p195
      // Predicated region
      $region9: #{fused_forward.1} parent=5 // pred_check
        _
      $region10: #{fused_forward.1} parent=5 // pred_check_branch
        %198 = sbr.rel (%p195) target = $region12
      $region11: #{fused_forward.1} parent=5 // pred_region
        %s199 = ssub.s32 %s23, 1
        // Predicated region
        $region13: #{fused_forward.1} parent=11 // pred_check
          %p200 = pneg %p96
        $region14: #{fused_forward.1} parent=11 // pred_check_branch
          %202 = sbr.rel (%p200) target = $region16
        $region15: #{fused_forward.1} parent=11 // pred_region
          %204 = vsyncadd [#allocation6], 0
          %s205 = sshll.u32 %s2, 4
          %s206 = int_to_ptr.hbm [resolvable:$true] %s205
          %s207 = sshll.u32 [#allocation7], 4
          %s208 = int_to_ptr.vmem [resolvable:$true] %s207
          %213 = dma.hbm_to_vmem [thread:$0]  %s206, 4096, %s208, [#allocation6], 128, 128, 8
        $region16: #{fused_forward.1} parent=11 // pred_fallthru
          _
        // Predicated region
        $region17: #{fused_forward.1} parent=11 // pred_check
          %p214 = pneg %p117
        $region18: #{fused_forward.1} parent=11 // pred_check_branch
          %216 = sbr.rel (%p214) target = $region20
        $region19: #{fused_forward.1} parent=11 // pred_region
          %218 = vsyncadd [#allocation9], 0
          %s220 = sshll.u32 %s3, 4
          %s221 = int_to_ptr.hbm [resolvable:$true] %s220
          %s222 = sshll.u32 [#allocation8], 4
          %s223 = int_to_ptr.vmem [resolvable:$true] %s222
          %225 = dma.hbm_to_vmem [thread:$0]  %s221, 32, %s223, [#allocation9]
        $region20: #{fused_forward.1} parent=11 // pred_fallthru
          _
        // Predicated region
        $region21: #{fused_forward.1} parent=11 // pred_check
          %p226 = pneg %p138
        $region22: #{fused_forward.1} parent=11 // pred_check_branch
          %228 = sbr.rel (%p226) target = $region24
        $region23: #{fused_forward.1} parent=11 // pred_region
          %230 = vsyncadd [#allocation9], 0
          %s231 = sshll.u32 %s4, 4
          %s232 = int_to_ptr.hbm [resolvable:$true] %s231
          %s233 = sshll.u32 [#allocation10], 4
          %s234 = int_to_ptr.vmem [resolvable:$true] %s233
          %239 = dma.hbm_to_vmem [thread:$0]  %s232, 16384, %s234, [#allocation9], 512, 512, 32
        $region24: #{fused_forward.1} parent=11 // pred_fallthru
          _
        // Predicated region
        $region25: #{fused_forward.1} parent=11 // pred_check
          %p240 = pneg %p159
        $region26: #{fused_forward.1} parent=11 // pred_check_branch
          %242 = sbr.rel (%p240) target = $region28
        $region27: #{fused_forward.1} parent=11 // pred_region
          %244 = vsyncadd [#allocation12], 0
          %s246 = sshll.u32 %s5, 4
          %s247 = int_to_ptr.hbm [resolvable:$true] %s246
          %s248 = sshll.u32 [#allocation11], 4
          %s249 = int_to_ptr.vmem [resolvable:$true] %s248
          %251 = dma.hbm_to_vmem [thread:$0]  %s247, 128, %s249, [#allocation12]
        $region28: #{fused_forward.1} parent=11 // pred_fallthru
          _
      $region12: #{fused_forward.1} parent=5 // pred_fallthru
        _
      %p252 = scmp.lt.s32.totalorder %s23, 4
      // Predicated region
      $region29: #{fused_forward.1} parent=5 // pred_check
        %p253 = pneg %p252
      $region30: #{fused_forward.1} parent=5 // pred_check_branch
        %255 = sbr.rel (%p253) target = $region32
      $region31: #{fused_forward.1} parent=5 // pred_region
        // Predicated region
        $region33: #{fused_forward.1} parent=31 // pred_check
          %p256 = pneg %p43
        $region34: #{fused_forward.1} parent=31 // pred_check_branch
          %258 = sbr.rel (%p256) target = $region36
        $region35: #{fused_forward.1} parent=31 // pred_region
          %s259 = sand.u32 %s33, 1
          %s260 = scalar_lea.sflag [#allocation3], %s259
          %s261 = sand.u32 %s33, 1
          %s262 = smul.addr %s261, 192
          %s263 = scalar_lea.vmem [#allocation2], %s262
          %s264 = smul.u32 12, %s23
          %266 = vsyncadd %s260, 0
          %s267 = smul.addr %s264, 2
          %s268 = smul.addr %s267, 8
          %s269 = scalar_lea.hbm %s0, %s268
          %s270 = sshll.u32 %s269, 4
          %s271 = int_to_ptr.hbm [resolvable:$true] %s270
          %s272 = sshll.u32 %s263, 4
          %s273 = int_to_ptr.vmem [resolvable:$true] %s272
          %278 = dma.hbm_to_vmem [thread:$0]  %s271, 3072, %s273, %s260, 256, 256, 16
        $region36: #{fused_forward.1} parent=31 // pred_fallthru
          _
        // Predicated region
        $region37: #{fused_forward.1} parent=31 // pred_check
          %p279 = pneg %p69
        $region38: #{fused_forward.1} parent=31 // pred_check_branch
          %281 = sbr.rel (%p279) target = $region40
        $region39: #{fused_forward.1} parent=31 // pred_region
          %s282 = sand.u32 %s23, 1
          %s283 = scalar_lea.sflag [#allocation6], %s282
          %s284 = sand.u32 %s59, 1
          %s285 = smul.addr %s284, 192
          %s286 = scalar_lea.vmem [#allocation5], %s285
          %s287 = smul.u32 12, %s23
          %289 = vsyncadd %s283, 0
          %s290 = smul.addr %s287, 2
          %s291 = smul.addr %s290, 8
          %s292 = scalar_lea.hbm %s1, %s291
          %s293 = sshll.u32 %s292, 4
          %s294 = int_to_ptr.hbm [resolvable:$true] %s293
          %s295 = sshll.u32 %s286, 4
          %s296 = int_to_ptr.vmem [resolvable:$true] %s295
          %301 = dma.hbm_to_vmem [thread:$0]  %s294, 3072, %s296, %s283, 256, 256, 16
        $region40: #{fused_forward.1} parent=31 // pred_fallthru
          _
      $region32: #{fused_forward.1} parent=5 // pred_fallthru
        _
      %p302 = scmp.le.s32.totalorder 1, %s23
      %p303 = scmp.lt.s32.totalorder %s23, 5
      %p304 = pnand %p302, %p303
      %p305 = pneg %p304
      // Predicated region
      $region41: #{fused_forward.1} parent=5 // pred_check
        _
      $region42: #{fused_forward.1} parent=5 // pred_check_branch
        %307 = sbr.rel (%p304) target = $region44
      $region43: #{fused_forward.1} parent=5 // pred_region
        %s308 = ssub.s32 %s23, 1
        %s309 = sand.u32 %s36, 1
        %s310 = scalar_lea.sflag [#allocation3], %s309
        %s311 = sand.u32 %s36, 1
        %s312 = smul.addr %s311, 192
        %s313 = scalar_lea.vmem [#allocation2], %s312
        // Predicated region
        $region45: #{fused_forward.1} parent=43 // pred_check
          %p314 = pneg %p49
        $region46: #{fused_forward.1} parent=43 // pred_check_branch
          %316 = sbr.rel (%p314) target = $region48
        $region47: #{fused_forward.1} parent=43 // pred_region
          %318 = dma.done %s310, 3072
        $region48: #{fused_forward.1} parent=43 // pred_fallthru
          _
        %s319 = sand.u32 %s28, 1
        %s320 = scalar_lea.sflag [#allocation6], %s319
        %s321 = sand.u32 %s62, 1
        %s322 = smul.addr %s321, 192
        %s323 = scalar_lea.vmem [#allocation5], %s322
        // Predicated region
        $region49: #{fused_forward.1} parent=43 // pred_check
          %p324 = pneg %p75
        $region50: #{fused_forward.1} parent=43 // pred_check_branch
          %326 = sbr.rel (%p324) target = $region52
        $region51: #{fused_forward.1} parent=43 // pred_region
          %328 = dma.done %s320, 3072
        $region52: #{fused_forward.1} parent=43 // pred_fallthru
          _
        // Predicated region
        $region53: #{fused_forward.1} parent=43 // pred_check
          %p329 = pneg %p96
        $region54: #{fused_forward.1} parent=43 // pred_check_branch
          %331 = sbr.rel (%p329) target = $region56
        $region55: #{fused_forward.1} parent=43 // pred_region
          %333 = dma.done [#allocation6], 4096
        $region56: #{fused_forward.1} parent=43 // pred_fallthru
          _
        // Predicated region
        $region57: #{fused_forward.1} parent=43 // pred_check
          %p334 = pneg %p117
        $region58: #{fused_forward.1} parent=43 // pred_check_branch
          %336 = sbr.rel (%p334) target = $region60
        $region59: #{fused_forward.1} parent=43 // pred_region
          %338 = dma.done [#allocation9], 32
        $region60: #{fused_forward.1} parent=43 // pred_fallthru
          _
        // Predicated region
        $region61: #{fused_forward.1} parent=43 // pred_check
          %p339 = pneg %p138
        $region62: #{fused_forward.1} parent=43 // pred_check_branch
          %341 = sbr.rel (%p339) target = $region64
        $region63: #{fused_forward.1} parent=43 // pred_region
          %343 = dma.done [#allocation9], 16384
        $region64: #{fused_forward.1} parent=43 // pred_fallthru
          _
        // Predicated region
        $region65: #{fused_forward.1} parent=43 // pred_check
          %p344 = pneg %p159
        $region66: #{fused_forward.1} parent=43 // pred_check_branch
          %346 = sbr.rel (%p344) target = $region68
        $region67: #{fused_forward.1} parent=43 // pred_region
          %348 = dma.done [#allocation12], 128
        $region68: #{fused_forward.1} parent=43 // pred_fallthru
          _
        %s349 = sand.u32 %s36, 1
        %s350 = scalar_lea.sflag [#allocation3], %s349
        %s351 = sand.u32 %s36, 1
        %s352 = smul.addr %s351, 192
        %s353 = scalar_lea.vmem [#allocation2], %s352
        %p354 = pneg %p49
        %p355 = pneg %p46
        %s356 = sand.u32 %s28, 1
        %s357 = scalar_lea.sflag [#allocation6], %s356
        %s358 = sand.u32 %s62, 1
        %s359 = smul.addr %s358, 192
        %s360 = scalar_lea.vmem [#allocation5], %s359
        %p361 = pneg %p75
        %p362 = pneg %p72
        %p363 = pneg %p96
        %p364 = pneg %p93
        %p365 = pneg %p117
        %p366 = pneg %p114
        %p367 = pneg %p138
        %p368 = pneg %p135
        %p369 = pneg %p159
        %p370 = pneg %p156
        %p371 = pneg %p185
        %p372 = pneg %p182
        %s373 = sand.u32 %s172, 1
        %s374 = scalar_lea.sflag [#allocation4], %s373
        %s375 = sand.u32 %s172, 1
        %s376 = smul.addr %s375, 768
        %s377 = scalar_lea.vmem [#allocation13], %s376
        %s378 = smul.u32 12, %s28
        %s379 = smul.u32 12, %s28
        %s380 = smul.u32 12, %s28
        %v381 = vld [vmem:[%s313] sm:$0xff]
        %v382 = vld [vmem:[%s313 + $0x8] sm:$0xff]
        %v383 = vld [vmem:[%s313 + $0x10] sm:$0xff]
        %v384 = vld [vmem:[%s313 + $0x18] sm:$0xff]
        %v385 = vld [vmem:[%s313 + $0x20] sm:$0xff]
        %v386 = vld [vmem:[%s313 + $0x28] sm:$0xff]
        %v387 = vld [vmem:[%s313 + $0x30] sm:$0xff]
        %v388 = vld [vmem:[%s313 + $0x38] sm:$0xff]
        %v389 = vld [vmem:[%s313 + $0x40] sm:$0xff]
        %v390 = vld [vmem:[%s313 + $0x48] sm:$0xff]
        %v391 = vld [vmem:[%s313 + $0x50] sm:$0xff]
        %v392 = vld [vmem:[%s313 + $0x58] sm:$0xff]
        %v393 = vld [vmem:[%s313 + $0x60] sm:$0xff]
        %v394 = vld [vmem:[%s313 + $0x68] sm:$0xff]
        %v395 = vld [vmem:[%s313 + $0x70] sm:$0xff]
        %v396 = vld [vmem:[%s313 + $0x78] sm:$0xff]
        %v397 = vld [vmem:[%s313 + $0x80] sm:$0xff]
        %v398 = vld [vmem:[%s313 + $0x88] sm:$0xff]
        %v399 = vld [vmem:[%s313 + $0x90] sm:$0xff]
        %v400 = vld [vmem:[%s313 + $0x98] sm:$0xff]
        %v401 = vld [vmem:[%s313 + $0xa0] sm:$0xff]
        %v402 = vld [vmem:[%s313 + $0xa8] sm:$0xff]
        %v403 = vld [vmem:[%s313 + $0xb0] sm:$0xff]
        %v404 = vld [vmem:[%s313 + $0xb8] sm:$0xff]
        %v405 = vpack.c.bf16 %v383, %v381
        %v406 = vpack.c.bf16 %v384, %v382
        %v407 = vpack.c.bf16 %v387, %v385
        %v408 = vpack.c.bf16 %v388, %v386
        %v409 = vpack.c.bf16 %v391, %v389
        %v410 = vpack.c.bf16 %v392, %v390
        %v411 = vpack.c.bf16 %v395, %v393
        %v412 = vpack.c.bf16 %v396, %v394
        %v413 = vpack.c.bf16 %v399, %v397
        %v414 = vpack.c.bf16 %v400, %v398
        %v415 = vpack.c.bf16 %v403, %v401
        %v416 = vpack.c.bf16 %v404, %v402
        %v417 = vld [vmem:[#allocation7] sm:$0xff]
        %v418 = vld [vmem:[#allocation7 + $0x8] sm:$0xff]
        %v419 = vld [vmem:[#allocation7 + $0x10] sm:$0xff]
        %v420 = vld [vmem:[#allocation7 + $0x18] sm:$0xff]
        %v421 = vld [vmem:[#allocation7 + $0x20] sm:$0xff]
        %v422 = vld [vmem:[#allocation7 + $0x28] sm:$0xff]
        %v423 = vld [vmem:[#allocation7 + $0x30] sm:$0xff]
        %v424 = vld [vmem:[#allocation7 + $0x38] sm:$0xff]
        %v425 = vld [vmem:[#allocation7 + $0x40] sm:$0xff]
        %v426 = vld [vmem:[#allocation7 + $0x48] sm:$0xff]
        %v427 = vld [vmem:[#allocation7 + $0x50] sm:$0xff]
        %v428 = vld [vmem:[#allocation7 + $0x58] sm:$0xff]
        %v429 = vld [vmem:[#allocation7 + $0x60] sm:$0xff]
        %v430 = vld [vmem:[#allocation7 + $0x68] sm:$0xff]
        %v431 = vld [vmem:[#allocation7 + $0x70] sm:$0xff]
        %v432 = vld [vmem:[#allocation7 + $0x78] sm:$0xff]
        %v433 = vld [vmem:[#allocation7 + $0x80] sm:$0xff]
        %v434 = vld [vmem:[#allocation7 + $0x88] sm:$0xff]
        %v435 = vld [vmem:[#allocation7 + $0x90] sm:$0xff]
        %v436 = vld [vmem:[#allocation7 + $0x98] sm:$0xff]
        %v437 = vld [vmem:[#allocation7 + $0xa0] sm:$0xff]
        %v438 = vld [vmem:[#allocation7 + $0xa8] sm:$0xff]
        %v439 = vld [vmem:[#allocation7 + $0xb0] sm:$0xff]
        %v440 = vld [vmem:[#allocation7 + $0xb8] sm:$0xff]
        %v441 = vld [vmem:[#allocation7 + $0xc0] sm:$0xff]
        %v442 = vld [vmem:[#allocation7 + $0xc8] sm:$0xff]
        %v443 = vld [vmem:[#allocation7 + $0xd0] sm:$0xff]
        %v444 = vld [vmem:[#allocation7 + $0xd8] sm:$0xff]
        %v445 = vld [vmem:[#allocation7 + $0xe0] sm:$0xff]
        %v446 = vld [vmem:[#allocation7 + $0xe8] sm:$0xff]
        %v447 = vld [vmem:[#allocation7 + $0xf0] sm:$0xff]
        %v448 = vld [vmem:[#allocation7 + $0xf8] sm:$0xff]
        %v449 = vld [vmem:[#allocation8] sm:$0x3]
        %v451 = vperm.slane %v449, 0
        %v452 = vperm.slane %v449, 1
        %v487 = vunpack.c.l.b16 %v417
        %v488 = vunpack.c.h.b16 %v417
        %v489 = vunpack.c.l.b16 %v418
        %v490 = vunpack.c.h.b16 %v418
        %v491 = vunpack.c.l.b16 %v419
        %v492 = vunpack.c.h.b16 %v419
        %v493 = vunpack.c.l.b16 %v420
        %v494 = vunpack.c.h.b16 %v420
        %v495 = vunpack.c.l.b16 %v421
        %v496 = vunpack.c.h.b16 %v421
        %v497 = vunpack.c.l.b16 %v422
        %v498 = vunpack.c.h.b16 %v422
        %v499 = vunpack.c.l.b16 %v423
        %v500 = vunpack.c.h.b16 %v423
        %v501 = vunpack.c.l.b16 %v424
        %v502 = vunpack.c.h.b16 %v424
        %v503 = vunpack.c.l.b16 %v425
        %v504 = vunpack.c.h.b16 %v425
        %v505 = vunpack.c.l.b16 %v426
        %v506 = vunpack.c.h.b16 %v426
        %v507 = vunpack.c.l.b16 %v427
        %v508 = vunpack.c.h.b16 %v427
        %v509 = vunpack.c.l.b16 %v428
        %v510 = vunpack.c.h.b16 %v428
        %v511 = vunpack.c.l.b16 %v429
        %v512 = vunpack.c.h.b16 %v429
        %v513 = vunpack.c.l.b16 %v430
        %v514 = vunpack.c.h.b16 %v430
        %v515 = vunpack.c.l.b16 %v431
        %v516 = vunpack.c.h.b16 %v431
        %v517 = vunpack.c.l.b16 %v432
        %v518 = vunpack.c.h.b16 %v432
        %v519 = vunpack.c.l.b16 %v433
        %v520 = vunpack.c.h.b16 %v433
        %v521 = vunpack.c.l.b16 %v434
        %v522 = vunpack.c.h.b16 %v434
        %v523 = vunpack.c.l.b16 %v435
        %v524 = vunpack.c.h.b16 %v435
        %v525 = vunpack.c.l.b16 %v436
        %v526 = vunpack.c.h.b16 %v436
        %v527 = vunpack.c.l.b16 %v437
        %v528 = vunpack.c.h.b16 %v437
        %v529 = vunpack.c.l.b16 %v438
        %v530 = vunpack.c.h.b16 %v438
        %v531 = vunpack.c.l.b16 %v439
        %v532 = vunpack.c.h.b16 %v439
        %v533 = vunpack.c.l.b16 %v440
        %v534 = vunpack.c.h.b16 %v440
        %v535 = vunpack.c.l.b16 %v441
        %v536 = vunpack.c.h.b16 %v441
        %v537 = vunpack.c.l.b16 %v442
        %v538 = vunpack.c.h.b16 %v442
        %v539 = vunpack.c.l.b16 %v443
        %v540 = vunpack.c.h.b16 %v443
        %v541 = vunpack.c.l.b16 %v444
        %v542 = vunpack.c.h.b16 %v444
        %v543 = vunpack.c.l.b16 %v445
        %v544 = vunpack.c.h.b16 %v445
        %v545 = vunpack.c.l.b16 %v446
        %v546 = vunpack.c.h.b16 %v446
        %v547 = vunpack.c.l.b16 %v447
        %v548 = vunpack.c.h.b16 %v447
        %v549 = vunpack.c.l.b16 %v448
        %v550 = vunpack.c.h.b16 %v448
        %v551 = vpack.c.b16 %v489, %v487
        %v552 = vpack.c.b16 %v490, %v488
        %v553 = vpack.c.b16 %v493, %v491
        %v554 = vpack.c.b16 %v494, %v492
        %v555 = vpack.c.b16 %v497, %v495
        %v556 = vpack.c.b16 %v498, %v496
        %v557 = vpack.c.b16 %v501, %v499
        %v558 = vpack.c.b16 %v502, %v500
        %v559 = vpack.c.b16 %v505, %v503
        %v560 = vpack.c.b16 %v506, %v504
        %v561 = vpack.c.b16 %v509, %v507
        %v562 = vpack.c.b16 %v510, %v508
        %v563 = vpack.c.b16 %v513, %v511
        %v564 = vpack.c.b16 %v514, %v512
        %v565 = vpack.c.b16 %v517, %v515
        %v566 = vpack.c.b16 %v518, %v516
        %v567 = vpack.c.b16 %v521, %v519
        %v568 = vpack.c.b16 %v522, %v520
        %v569 = vpack.c.b16 %v525, %v523
        %v570 = vpack.c.b16 %v526, %v524
        %v571 = vpack.c.b16 %v529, %v527
        %v572 = vpack.c.b16 %v530, %v528
        %v573 = vpack.c.b16 %v533, %v531
        %v574 = vpack.c.b16 %v534, %v532
        %v575 = vpack.c.b16 %v537, %v535
        %v576 = vpack.c.b16 %v538, %v536
        %v577 = vpack.c.b16 %v541, %v539
        %v578 = vpack.c.b16 %v542, %v540
        %v579 = vpack.c.b16 %v545, %v543
        %v580 = vpack.c.b16 %v546, %v544
        %v581 = vpack.c.b16 %v549, %v547
        %v582 = vpack.c.b16 %v550, %v548
        %615 = vmatpush.bf16.msra.mxu0 %v565
        %616 = vmatpush.bf16.msra.mxu0 %v563
        %617 = vmatpush.bf16.msra.mxu0 %v561
        %618 = vmatpush.bf16.msra.mxu0 %v559
        %619 = vmatpush.bf16.msra.mxu0 %v557
        %620 = vmatpush.bf16.msra.mxu0 %v555
        %621 = vmatpush.bf16.msra.mxu0 %v553
        %622 = vmatpush.bf16.msra.mxu0 %v551
        %623 = vmatmul.bf16.gmra.mxu0 %v405
        %v624 = vpop.f32.mrf.mxu0
        %v625 = vadd.f32 %v451, %v624
        %v626 = vpop.f32.mrf.mxu0
        %v627 = vadd.f32 %v451, %v626
        %628 = vmatmul.bf16.gmra.mxu0 %v407
        %v629 = vpop.f32.mrf.mxu0
        %v630 = vadd.f32 %v451, %v629
        %v631 = vpop.f32.mrf.mxu0
        %v632 = vadd.f32 %v451, %v631
        %633 = vmatmul.bf16.gmra.mxu0 %v409
        %v634 = vpop.f32.mrf.mxu0
        %v635 = vadd.f32 %v451, %v634
        %v636 = vpop.f32.mrf.mxu0
        %v637 = vadd.f32 %v451, %v636
        %638 = vmatmul.bf16.gmra.mxu0 %v411
        %v639 = vpop.f32.mrf.mxu0
        %v640 = vadd.f32 %v451, %v639
        %v641 = vpop.f32.mrf.mxu0
        %v642 = vadd.f32 %v451, %v641
        %643 = vmatmul.bf16.gmra.mxu0 %v413
        %v644 = vpop.f32.mrf.mxu0
        %v645 = vadd.f32 %v451, %v644
        %v646 = vpop.f32.mrf.mxu0
        %v647 = vadd.f32 %v451, %v646
        %648 = vmatmul.bf16.gmra.mxu0 %v415
        %v649 = vpop.f32.mrf.mxu0
        %v650 = vadd.f32 %v451, %v649
        %v651 = vpop.f32.mrf.mxu0
        %v652 = vadd.f32 %v451, %v651
        %653 = vdwg.mxu0
        %654 = vmatpush.bf16.msra.mxu0 %v581
        %655 = vmatpush.bf16.msra.mxu0 %v579
        %656 = vmatpush.bf16.msra.mxu0 %v577
        %657 = vmatpush.bf16.msra.mxu0 %v575
        %658 = vmatpush.bf16.msra.mxu0 %v573
        %659 = vmatpush.bf16.msra.mxu0 %v571
        %660 = vmatpush.bf16.msra.mxu0 %v569
        %661 = vmatpush.bf16.msra.mxu0 %v567
        %662 = vmatmul.bf16.gmra.mxu0 %v406
        %v663 = vpop.f32.mrf.mxu0
        %v664 = vadd.f32 %v625, %v663
        %v665 = vpop.f32.mrf.mxu0
        %v666 = vadd.f32 %v627, %v665
        %667 = vmatmul.bf16.gmra.mxu0 %v408
        %v668 = vpop.f32.mrf.mxu0
        %v669 = vadd.f32 %v630, %v668
        %v670 = vpop.f32.mrf.mxu0
        %v671 = vadd.f32 %v632, %v670
        %672 = vmatmul.bf16.gmra.mxu0 %v410
        %v673 = vpop.f32.mrf.mxu0
        %v674 = vadd.f32 %v635, %v673
        %v675 = vpop.f32.mrf.mxu0
        %v676 = vadd.f32 %v637, %v675
        %677 = vmatmul.bf16.gmra.mxu0 %v412
        %v678 = vpop.f32.mrf.mxu0
        %v679 = vadd.f32 %v640, %v678
        %v680 = vpop.f32.mrf.mxu0
        %v681 = vadd.f32 %v642, %v680
        %682 = vmatmul.bf16.gmra.mxu0 %v414
        %v683 = vpop.f32.mrf.mxu0
        %v684 = vadd.f32 %v645, %v683
        %v685 = vpop.f32.mrf.mxu0
        %v686 = vadd.f32 %v647, %v685
        %687 = vmatmul.bf16.gmra.mxu0 %v416
        %v688 = vpop.f32.mrf.mxu0
        %v689 = vadd.f32 %v650, %v688
        %v690 = vpop.f32.mrf.mxu0
        %v691 = vadd.f32 %v652, %v690
        %692 = vdwg.mxu0
        %693 = vmatpush.bf16.msra.mxu0 %v566
        %694 = vmatpush.bf16.msra.mxu0 %v564
        %695 = vmatpush.bf16.msra.mxu0 %v562
        %696 = vmatpush.bf16.msra.mxu0 %v560
        %697 = vmatpush.bf16.msra.mxu0 %v558
        %698 = vmatpush.bf16.msra.mxu0 %v556
        %699 = vmatpush.bf16.msra.mxu0 %v554
        %700 = vmatpush.bf16.msra.mxu0 %v552
        %701 = vmatmul.bf16.gmra.mxu0 %v405
        %v702 = vpop.f32.mrf.mxu0
        %v703 = vadd.f32 %v452, %v702
        %v704 = vpop.f32.mrf.mxu0
        %v705 = vadd.f32 %v452, %v704
        %706 = vmatmul.bf16.gmra.mxu0 %v407
        %v707 = vpop.f32.mrf.mxu0
        %v708 = vadd.f32 %v452, %v707
        %v709 = vpop.f32.mrf.mxu0
        %v710 = vadd.f32 %v452, %v709
        %711 = vmatmul.bf16.gmra.mxu0 %v409
        %v712 = vpop.f32.mrf.mxu0
        %v713 = vadd.f32 %v452, %v712
        %v714 = vpop.f32.mrf.mxu0
        %v715 = vadd.f32 %v452, %v714
        %716 = vmatmul.bf16.gmra.mxu0 %v411
        %v717 = vpop.f32.mrf.mxu0
        %v718 = vadd.f32 %v452, %v717
        %v719 = vpop.f32.mrf.mxu0
        %v720 = vadd.f32 %v452, %v719
        %721 = vmatmul.bf16.gmra.mxu0 %v413
        %v722 = vpop.f32.mrf.mxu0
        %v723 = vadd.f32 %v452, %v722
        %v724 = vpop.f32.mrf.mxu0
        %v725 = vadd.f32 %v452, %v724
        %726 = vmatmul.bf16.gmra.mxu0 %v415
        %v727 = vpop.f32.mrf.mxu0
        %v728 = vadd.f32 %v452, %v727
        %v729 = vpop.f32.mrf.mxu0
        %v730 = vadd.f32 %v452, %v729
        %731 = vdwg.mxu0
        %732 = vmatpush.bf16.msra.mxu0 %v582
        %733 = vmatpush.bf16.msra.mxu0 %v580
        %734 = vmatpush.bf16.msra.mxu0 %v578
        %735 = vmatpush.bf16.msra.mxu0 %v576
        %736 = vmatpush.bf16.msra.mxu0 %v574
        %737 = vmatpush.bf16.msra.mxu0 %v572
        %738 = vmatpush.bf16.msra.mxu0 %v570
        %739 = vmatpush.bf16.msra.mxu0 %v568
        %740 = vmatmul.bf16.gmra.mxu0 %v406
        %v741 = vpop.f32.mrf.mxu0
        %v742 = vadd.f32 %v703, %v741
        %v743 = vpop.f32.mrf.mxu0
        %v744 = vadd.f32 %v705, %v743
        %745 = vmatmul.bf16.gmra.mxu0 %v408
        %v746 = vpop.f32.mrf.mxu0
        %v747 = vadd.f32 %v708, %v746
        %v748 = vpop.f32.mrf.mxu0
        %v749 = vadd.f32 %v710, %v748
        %750 = vmatmul.bf16.gmra.mxu0 %v410
        %v751 = vpop.f32.mrf.mxu0
        %v752 = vadd.f32 %v713, %v751
        %v753 = vpop.f32.mrf.mxu0
        %v754 = vadd.f32 %v715, %v753
        %755 = vmatmul.bf16.gmra.mxu0 %v412
        %v756 = vpop.f32.mrf.mxu0
        %v757 = vadd.f32 %v718, %v756
        %v758 = vpop.f32.mrf.mxu0
        %v759 = vadd.f32 %v720, %v758
        %760 = vmatmul.bf16.gmra.mxu0 %v414
        %v761 = vpop.f32.mrf.mxu0
        %v762 = vadd.f32 %v723, %v761
        %v763 = vpop.f32.mrf.mxu0
        %v764 = vadd.f32 %v725, %v763
        %765 = vmatmul.bf16.gmra.mxu0 %v416
        %v766 = vpop.f32.mrf.mxu0
        %v767 = vadd.f32 %v728, %v766
        %v768 = vpop.f32.mrf.mxu0
        %v769 = vadd.f32 %v730, %v768
        %770 = vdwg.mxu0
        %v771 = vld [vmem:[%s323] sm:$0xff]
        %v772 = vld [vmem:[%s323 + $0x8] sm:$0xff]
        %v773 = vld [vmem:[%s323 + $0x10] sm:$0xff]
        %v774 = vld [vmem:[%s323 + $0x18] sm:$0xff]
        %v775 = vld [vmem:[%s323 + $0x20] sm:$0xff]
        %v776 = vld [vmem:[%s323 + $0x28] sm:$0xff]
        %v777 = vld [vmem:[%s323 + $0x30] sm:$0xff]
        %v778 = vld [vmem:[%s323 + $0x38] sm:$0xff]
        %v779 = vld [vmem:[%s323 + $0x40] sm:$0xff]
        %v780 = vld [vmem:[%s323 + $0x48] sm:$0xff]
        %v781 = vld [vmem:[%s323 + $0x50] sm:$0xff]
        %v782 = vld [vmem:[%s323 + $0x58] sm:$0xff]
        %v783 = vld [vmem:[%s323 + $0x60] sm:$0xff]
        %v784 = vld [vmem:[%s323 + $0x68] sm:$0xff]
        %v785 = vld [vmem:[%s323 + $0x70] sm:$0xff]
        %v786 = vld [vmem:[%s323 + $0x78] sm:$0xff]
        %v787 = vld [vmem:[%s323 + $0x80] sm:$0xff]
        %v788 = vld [vmem:[%s323 + $0x88] sm:$0xff]
        %v789 = vld [vmem:[%s323 + $0x90] sm:$0xff]
        %v790 = vld [vmem:[%s323 + $0x98] sm:$0xff]
        %v791 = vld [vmem:[%s323 + $0xa0] sm:$0xff]
        %v792 = vld [vmem:[%s323 + $0xa8] sm:$0xff]
        %v793 = vld [vmem:[%s323 + $0xb0] sm:$0xff]
        %v794 = vld [vmem:[%s323 + $0xb8] sm:$0xff]
        %v795 = vadd.f32 %v664, %v771
        %v796 = vadd.f32 %v742, %v772
        %v797 = vadd.f32 %v666, %v773
        %v798 = vadd.f32 %v744, %v774
        %v799 = vadd.f32 %v669, %v775
        %v800 = vadd.f32 %v747, %v776
        %v801 = vadd.f32 %v671, %v777
        %v802 = vadd.f32 %v749, %v778
        %v803 = vadd.f32 %v674, %v779
        %v804 = vadd.f32 %v752, %v780
        %v805 = vadd.f32 %v676, %v781
        %v806 = vadd.f32 %v754, %v782
        %v807 = vadd.f32 %v679, %v783
        %v808 = vadd.f32 %v757, %v784
        %v809 = vadd.f32 %v681, %v785
        %v810 = vadd.f32 %v759, %v786
        %v811 = vadd.f32 %v684, %v787
        %v812 = vadd.f32 %v762, %v788
        %v813 = vadd.f32 %v686, %v789
        %v814 = vadd.f32 %v764, %v790
        %v815 = vadd.f32 %v689, %v791
        %v816 = vadd.f32 %v767, %v792
        %v817 = vadd.f32 %v691, %v793
        %v818 = vadd.f32 %v769, %v794
        %v819 = vadd.f32 %v795, %v796
        %820 = vadd.xlane.f32.xlu0 %v819
        %v821 = vpop.xlane.xlu0 %820
        %v822 = vadd.f32 %v797, %v798
        %823 = vadd.xlane.f32.xlu0 %v822
        %v824 = vpop.xlane.xlu0 %823
        %v825 = vadd.f32 %v799, %v800
        %826 = vadd.xlane.f32.xlu0 %v825
        %v827 = vpop.xlane.xlu0 %826
        %v828 = vadd.f32 %v801, %v802
        %829 = vadd.xlane.f32.xlu0 %v828
        %v830 = vpop.xlane.xlu0 %829
        %v831 = vadd.f32 %v803, %v804
        %832 = vadd.xlane.f32.xlu0 %v831
        %v833 = vpop.xlane.xlu0 %832
        %v834 = vadd.f32 %v805, %v806
        %835 = vadd.xlane.f32.xlu0 %v834
        %v836 = vpop.xlane.xlu0 %835
        %v837 = vadd.f32 %v807, %v808
        %838 = vadd.xlane.f32.xlu0 %v837
        %v839 = vpop.xlane.xlu0 %838
        %v840 = vadd.f32 %v809, %v810
        %841 = vadd.xlane.f32.xlu0 %v840
        %v842 = vpop.xlane.xlu0 %841
        %v843 = vadd.f32 %v811, %v812
        %844 = vadd.xlane.f32.xlu0 %v843
        %v845 = vpop.xlane.xlu0 %844
        %v846 = vadd.f32 %v813, %v814
        %847 = vadd.xlane.f32.xlu0 %v846
        %v848 = vpop.xlane.xlu0 %847
        %v849 = vadd.f32 %v815, %v816
        %850 = vadd.xlane.f32.xlu0 %v849
        %v851 = vpop.xlane.xlu0 %850
        %v852 = vadd.f32 %v817, %v818
        %853 = vadd.xlane.f32.xlu0 %v852
        %v854 = vpop.xlane.xlu0 %853
        %v855 = vrcp.pop 256.0
        %v856 = vmul.f32 256.0, %v855
        %v857 = vsub.f32 1.0, %v856
        %v858 = vmul.f32 %v855, %v857
        %v859 = vadd.f32 %v855, %v858
        %vm860 = vweird.f32 %v855
        %v861 = vsel %vm860, %v855, %v859
        %v862 = vmul.f32 %v821, %v861
        %v863 = vmul.f32 %v824, %v861
        %v864 = vmul.f32 %v827, %v861
        %v865 = vmul.f32 %v830, %v861
        %v866 = vmul.f32 %v833, %v861
        %v867 = vmul.f32 %v836, %v861
        %v868 = vmul.f32 %v839, %v861
        %v869 = vmul.f32 %v842, %v861
        %v870 = vmul.f32 %v845, %v861
        %v871 = vmul.f32 %v848, %v861
        %v872 = vmul.f32 %v851, %v861
        %v873 = vmul.f32 %v854, %v861
        %v874 = vsub.f32 %v795, %v862
        %v875 = vsub.f32 %v796, %v862
        %v876 = vsub.f32 %v797, %v863
        %v877 = vsub.f32 %v798, %v863
        %v878 = vsub.f32 %v799, %v864
        %v879 = vsub.f32 %v800, %v864
        %v880 = vsub.f32 %v801, %v865
        %v881 = vsub.f32 %v802, %v865
        %v882 = vsub.f32 %v803, %v866
        %v883 = vsub.f32 %v804, %v866
        %v884 = vsub.f32 %v805, %v867
        %v885 = vsub.f32 %v806, %v867
        %v886 = vsub.f32 %v807, %v868
        %v887 = vsub.f32 %v808, %v868
        %v888 = vsub.f32 %v809, %v869
        %v889 = vsub.f32 %v810, %v869
        %v890 = vsub.f32 %v811, %v870
        %v891 = vsub.f32 %v812, %v870
        %v892 = vsub.f32 %v813, %v871
        %v893 = vsub.f32 %v814, %v871
        %v894 = vsub.f32 %v815, %v872
        %v895 = vsub.f32 %v816, %v872
        %v896 = vsub.f32 %v817, %v873
        %v897 = vsub.f32 %v818, %v873
        %v898 = vmul.f32 %v874, %v874
        %v899 = vmul.f32 %v875, %v875
        %v900 = vmul.f32 %v876, %v876
        %v901 = vmul.f32 %v877, %v877
        %v902 = vmul.f32 %v878, %v878
        %v903 = vmul.f32 %v879, %v879
        %v904 = vmul.f32 %v880, %v880
        %v905 = vmul.f32 %v881, %v881
        %v906 = vmul.f32 %v882, %v882
        %v907 = vmul.f32 %v883, %v883
        %v908 = vmul.f32 %v884, %v884
        %v909 = vmul.f32 %v885, %v885
        %v910 = vmul.f32 %v886, %v886
        %v911 = vmul.f32 %v887, %v887
        %v912 = vmul.f32 %v888, %v888
        %v913 = vmul.f32 %v889, %v889
        %v914 = vmul.f32 %v890, %v890
        %v915 = vmul.f32 %v891, %v891
        %v916 = vmul.f32 %v892, %v892
        %v917 = vmul.f32 %v893, %v893
        %v918 = vmul.f32 %v894, %v894
        %v919 = vmul.f32 %v895, %v895
        %v920 = vmul.f32 %v896, %v896
        %v921 = vmul.f32 %v897, %v897
        %v922 = vadd.f32 %v898, %v899
        %923 = vadd.xlane.f32.xlu0 %v922
        %v924 = vpop.xlane.xlu0 %923
        %v925 = vadd.f32 %v900, %v901
        %926 = vadd.xlane.f32.xlu0 %v925
        %v927 = vpop.xlane.xlu0 %926
        %v928 = vadd.f32 %v902, %v903
        %929 = vadd.xlane.f32.xlu0 %v928
        %v930 = vpop.xlane.xlu0 %929
        %v931 = vadd.f32 %v904, %v905
        %932 = vadd.xlane.f32.xlu0 %v931
        %v933 = vpop.xlane.xlu0 %932
        %v934 = vadd.f32 %v906, %v907
        %935 = vadd.xlane.f32.xlu0 %v934
        %v936 = vpop.xlane.xlu0 %935
        %v937 = vadd.f32 %v908, %v909
        %938 = vadd.xlane.f32.xlu0 %v937
        %v939 = vpop.xlane.xlu0 %938
        %v940 = vadd.f32 %v910, %v911
        %941 = vadd.xlane.f32.xlu0 %v940
        %v942 = vpop.xlane.xlu0 %941
        %v943 = vadd.f32 %v912, %v913
        %944 = vadd.xlane.f32.xlu0 %v943
        %v945 = vpop.xlane.xlu0 %944
        %v946 = vadd.f32 %v914, %v915
        %947 = vadd.xlane.f32.xlu0 %v946
        %v948 = vpop.xlane.xlu0 %947
        %v949 = vadd.f32 %v916, %v917
        %950 = vadd.xlane.f32.xlu0 %v949
        %v951 = vpop.xlane.xlu0 %950
        %v952 = vadd.f32 %v918, %v919
        %953 = vadd.xlane.f32.xlu0 %v952
        %v954 = vpop.xlane.xlu0 %953
        %v955 = vadd.f32 %v920, %v921
        %956 = vadd.xlane.f32.xlu0 %v955
        %v957 = vpop.xlane.xlu0 %956
        %v958 = vmul.f32 %v924, %v861
        %v959 = vmul.f32 %v927, %v861
        %v960 = vmul.f32 %v930, %v861
        %v961 = vmul.f32 %v933, %v861
        %v962 = vmul.f32 %v936, %v861
        %v963 = vmul.f32 %v939, %v861
        %v964 = vmul.f32 %v942, %v861
        %v965 = vmul.f32 %v945, %v861
        %v966 = vmul.f32 %v948, %v861
        %v967 = vmul.f32 %v951, %v861
        %v968 = vmul.f32 %v954, %v861
        %v969 = vmul.f32 %v957, %v861
        %v970 = vadd.f32 %v958, 1e-12
        %v971 = vadd.f32 %v959, 1e-12
        %v972 = vadd.f32 %v960, 1e-12
        %v973 = vadd.f32 %v961, 1e-12
        %v974 = vadd.f32 %v962, 1e-12
        %v975 = vadd.f32 %v963, 1e-12
        %v976 = vadd.f32 %v964, 1e-12
        %v977 = vadd.f32 %v965, 1e-12
        %v978 = vadd.f32 %v966, 1e-12
        %v979 = vadd.f32 %v967, 1e-12
        %v980 = vadd.f32 %v968, 1e-12
        %v981 = vadd.f32 %v969, 1e-12
        %v982 = vrsqrt.pop %v970
        %v983 = vmul.f32 %v982, %v970
        %v984 = vmul.f32 %v983, %v982
        %v985 = vmul.f32 0.5, %v984
        %v986 = vsub.f32 1.5, %v985
        %v987 = vmul.f32 %v982, %v986
        %vm988 = vweird.f32 %v970
        %vm989 = vweird.f32 %v982
        %vm990 = vmor %vm988, %vm989
        %v991 = vsel %vm990, %v982, %v987
        %v992 = vrsqrt.pop %v971
        %v993 = vmul.f32 %v992, %v971
        %v994 = vmul.f32 %v993, %v992
        %v995 = vmul.f32 0.5, %v994
        %v996 = vsub.f32 1.5, %v995
        %v997 = vmul.f32 %v992, %v996
        %vm998 = vweird.f32 %v971
        %vm999 = vweird.f32 %v992
        %vm1000 = vmor %vm998, %vm999
        %v1001 = vsel %vm1000, %v992, %v997
        %v1002 = vrsqrt.pop %v972
        %v1003 = vmul.f32 %v1002, %v972
        %v1004 = vmul.f32 %v1003, %v1002
        %v1005 = vmul.f32 0.5, %v1004
        %v1006 = vsub.f32 1.5, %v1005
        %v1007 = vmul.f32 %v1002, %v1006
        %vm1008 = vweird.f32 %v972
        %vm1009 = vweird.f32 %v1002
        %vm1010 = vmor %vm1008, %vm1009
        %v1011 = vsel %vm1010, %v1002, %v1007
        %v1012 = vrsqrt.pop %v973
        %v1013 = vmul.f32 %v1012, %v973
        %v1014 = vmul.f32 %v1013, %v1012
        %v1015 = vmul.f32 0.5, %v1014
        %v1016 = vsub.f32 1.5, %v1015
        %v1017 = vmul.f32 %v1012, %v1016
        %vm1018 = vweird.f32 %v973
        %vm1019 = vweird.f32 %v1012
        %vm1020 = vmor %vm1018, %vm1019
        %v1021 = vsel %vm1020, %v1012, %v1017
        %v1022 = vrsqrt.pop %v974
        %v1023 = vmul.f32 %v1022, %v974
        %v1024 = vmul.f32 %v1023, %v1022
        %v1025 = vmul.f32 0.5, %v1024
        %v1026 = vsub.f32 1.5, %v1025
        %v1027 = vmul.f32 %v1022, %v1026
        %vm1028 = vweird.f32 %v974
        %vm1029 = vweird.f32 %v1022
        %vm1030 = vmor %vm1028, %vm1029
        %v1031 = vsel %vm1030, %v1022, %v1027
        %v1032 = vrsqrt.pop %v975
        %v1033 = vmul.f32 %v1032, %v975
        %v1034 = vmul.f32 %v1033, %v1032
        %v1035 = vmul.f32 0.5, %v1034
        %v1036 = vsub.f32 1.5, %v1035
        %v1037 = vmul.f32 %v1032, %v1036
        %vm1038 = vweird.f32 %v975
        %vm1039 = vweird.f32 %v1032
        %vm1040 = vmor %vm1038, %vm1039
        %v1041 = vsel %vm1040, %v1032, %v1037
        %v1042 = vrsqrt.pop %v976
        %v1043 = vmul.f32 %v1042, %v976
        %v1044 = vmul.f32 %v1043, %v1042
        %v1045 = vmul.f32 0.5, %v1044
        %v1046 = vsub.f32 1.5, %v1045
        %v1047 = vmul.f32 %v1042, %v1046
        %vm1048 = vweird.f32 %v976
        %vm1049 = vweird.f32 %v1042
        %vm1050 = vmor %vm1048, %vm1049
        %v1051 = vsel %vm1050, %v1042, %v1047
        %v1052 = vrsqrt.pop %v977
        %v1053 = vmul.f32 %v1052, %v977
        %v1054 = vmul.f32 %v1053, %v1052
        %v1055 = vmul.f32 0.5, %v1054
        %v1056 = vsub.f32 1.5, %v1055
        %v1057 = vmul.f32 %v1052, %v1056
        %vm1058 = vweird.f32 %v977
        %vm1059 = vweird.f32 %v1052
        %vm1060 = vmor %vm1058, %vm1059
        %v1061 = vsel %vm1060, %v1052, %v1057
        %v1062 = vrsqrt.pop %v978
        %v1063 = vmul.f32 %v1062, %v978
        %v1064 = vmul.f32 %v1063, %v1062
        %v1065 = vmul.f32 0.5, %v1064
        %v1066 = vsub.f32 1.5, %v1065
        %v1067 = vmul.f32 %v1062, %v1066
        %vm1068 = vweird.f32 %v978
        %vm1069 = vweird.f32 %v1062
        %vm1070 = vmor %vm1068, %vm1069
        %v1071 = vsel %vm1070, %v1062, %v1067
        %v1072 = vrsqrt.pop %v979
        %v1073 = vmul.f32 %v1072, %v979
        %v1074 = vmul.f32 %v1073, %v1072
        %v1075 = vmul.f32 0.5, %v1074
        %v1076 = vsub.f32 1.5, %v1075
        %v1077 = vmul.f32 %v1072, %v1076
        %vm1078 = vweird.f32 %v979
        %vm1079 = vweird.f32 %v1072
        %vm1080 = vmor %vm1078, %vm1079
        %v1081 = vsel %vm1080, %v1072, %v1077
        %v1082 = vrsqrt.pop %v980
        %v1083 = vmul.f32 %v1082, %v980
        %v1084 = vmul.f32 %v1083, %v1082
        %v1085 = vmul.f32 0.5, %v1084
        %v1086 = vsub.f32 1.5, %v1085
        %v1087 = vmul.f32 %v1082, %v1086
        %vm1088 = vweird.f32 %v980
        %vm1089 = vweird.f32 %v1082
        %vm1090 = vmor %vm1088, %vm1089
        %v1091 = vsel %vm1090, %v1082, %v1087
        %v1092 = vrsqrt.pop %v981
        %v1093 = vmul.f32 %v1092, %v981
        %v1094 = vmul.f32 %v1093, %v1092
        %v1095 = vmul.f32 0.5, %v1094
        %v1096 = vsub.f32 1.5, %v1095
        %v1097 = vmul.f32 %v1092, %v1096
        %vm1098 = vweird.f32 %v981
        %vm1099 = vweird.f32 %v1092
        %vm1100 = vmor %vm1098, %vm1099
        %v1101 = vsel %vm1100, %v1092, %v1097
        %v1102 = vmul.f32 %v874, %v991
        %v1103 = vmul.f32 %v875, %v991
        %v1104 = vmul.f32 %v876, %v1001
        %v1105 = vmul.f32 %v877, %v1001
        %v1106 = vmul.f32 %v878, %v1011
        %v1107 = vmul.f32 %v879, %v1011
        %v1108 = vmul.f32 %v880, %v1021
        %v1109 = vmul.f32 %v881, %v1021
        %v1110 = vmul.f32 %v882, %v1031
        %v1111 = vmul.f32 %v883, %v1031
        %v1112 = vmul.f32 %v884, %v1041
        %v1113 = vmul.f32 %v885, %v1041
        %v1114 = vmul.f32 %v886, %v1051
        %v1115 = vmul.f32 %v887, %v1051
        %v1116 = vmul.f32 %v888, %v1061
        %v1117 = vmul.f32 %v889, %v1061
        %v1118 = vmul.f32 %v890, %v1071
        %v1119 = vmul.f32 %v891, %v1071
        %v1120 = vmul.f32 %v892, %v1081
        %v1121 = vmul.f32 %v893, %v1081
        %v1122 = vmul.f32 %v894, %v1091
        %v1123 = vmul.f32 %v895, %v1091
        %v1124 = vmul.f32 %v896, %v1101
        %v1125 = vmul.f32 %v897, %v1101
        %v1126 = vpack.c.bf16 %v1104, %v1102
        %v1127 = vpack.c.bf16 %v1105, %v1103
        %v1128 = vpack.c.bf16 %v1108, %v1106
        %v1129 = vpack.c.bf16 %v1109, %v1107
        %v1130 = vpack.c.bf16 %v1112, %v1110
        %v1131 = vpack.c.bf16 %v1113, %v1111
        %v1132 = vpack.c.bf16 %v1116, %v1114
        %v1133 = vpack.c.bf16 %v1117, %v1115
        %v1134 = vpack.c.bf16 %v1120, %v1118
        %v1135 = vpack.c.bf16 %v1121, %v1119
        %v1136 = vpack.c.bf16 %v1124, %v1122
        %v1137 = vpack.c.bf16 %v1125, %v1123
        %v1138 = vld [vmem:[#allocation10] sm:$0xff]
        %v1139 = vld [vmem:[#allocation10 + $0x8] sm:$0xff]
        %v1140 = vld [vmem:[#allocation10 + $0x10] sm:$0xff]
        %v1141 = vld [vmem:[#allocation10 + $0x18] sm:$0xff]
        %v1142 = vld [vmem:[#allocation10 + $0x20] sm:$0xff]
        %v1143 = vld [vmem:[#allocation10 + $0x28] sm:$0xff]
        %v1144 = vld [vmem:[#allocation10 + $0x30] sm:$0xff]
        %v1145 = vld [vmem:[#allocation10 + $0x38] sm:$0xff]
        %v1146 = vld [vmem:[#allocation10 + $0x40] sm:$0xff]
        %v1147 = vld [vmem:[#allocation10 + $0x48] sm:$0xff]
        %v1148 = vld [vmem:[#allocation10 + $0x50] sm:$0xff]
        %v1149 = vld [vmem:[#allocation10 + $0x58] sm:$0xff]
        %v1150 = vld [vmem:[#allocation10 + $0x60] sm:$0xff]
        %v1151 = vld [vmem:[#allocation10 + $0x68] sm:$0xff]
        %v1152 = vld [vmem:[#allocation10 + $0x70] sm:$0xff]
        %v1153 = vld [vmem:[#allocation10 + $0x78] sm:$0xff]
        %v1154 = vld [vmem:[#allocation10 + $0x80] sm:$0xff]
        %v1155 = vld [vmem:[#allocation10 + $0x88] sm:$0xff]
        %v1156 = vld [vmem:[#allocation10 + $0x90] sm:$0xff]
        %v1157 = vld [vmem:[#allocation10 + $0x98] sm:$0xff]
        %v1158 = vld [vmem:[#allocation10 + $0xa0] sm:$0xff]
        %v1159 = vld [vmem:[#allocation10 + $0xa8] sm:$0xff]
        %v1160 = vld [vmem:[#allocation10 + $0xb0] sm:$0xff]
        %v1161 = vld [vmem:[#allocation10 + $0xb8] sm:$0xff]
        %v1162 = vld [vmem:[#allocation10 + $0xc0] sm:$0xff]
        %v1163 = vld [vmem:[#allocation10 + $0xc8] sm:$0xff]
        %v1164 = vld [vmem:[#allocation10 + $0xd0] sm:$0xff]
        %v1165 = vld [vmem:[#allocation10 + $0xd8] sm:$0xff]
        %v1166 = vld [vmem:[#allocation10 + $0xe0] sm:$0xff]
        %v1167 = vld [vmem:[#allocation10 + $0xe8] sm:$0xff]
        %v1168 = vld [vmem:[#allocation10 + $0xf0] sm:$0xff]
        %v1169 = vld [vmem:[#allocation10 + $0xf8] sm:$0xff]
        %v1170 = vld [vmem:[#allocation10 + $0x100] sm:$0xff]
        %v1171 = vld [vmem:[#allocation10 + $0x108] sm:$0xff]
        %v1172 = vld [vmem:[#allocation10 + $0x110] sm:$0xff]
        %v1173 = vld [vmem:[#allocation10 + $0x118] sm:$0xff]
        %v1174 = vld [vmem:[#allocation10 + $0x120] sm:$0xff]
        %v1175 = vld [vmem:[#allocation10 + $0x128] sm:$0xff]
        %v1176 = vld [vmem:[#allocation10 + $0x130] sm:$0xff]
        %v1177 = vld [vmem:[#allocation10 + $0x138] sm:$0xff]
        %v1178 = vld [vmem:[#allocation10 + $0x140] sm:$0xff]
        %v1179 = vld [vmem:[#allocation10 + $0x148] sm:$0xff]
        %v1180 = vld [vmem:[#allocation10 + $0x150] sm:$0xff]
        %v1181 = vld [vmem:[#allocation10 + $0x158] sm:$0xff]
        %v1182 = vld [vmem:[#allocation10 + $0x160] sm:$0xff]
        %v1183 = vld [vmem:[#allocation10 + $0x168] sm:$0xff]
        %v1184 = vld [vmem:[#allocation10 + $0x170] sm:$0xff]
        %v1185 = vld [vmem:[#allocation10 + $0x178] sm:$0xff]
        %v1186 = vld [vmem:[#allocation10 + $0x180] sm:$0xff]
        %v1187 = vld [vmem:[#allocation10 + $0x188] sm:$0xff]
        %v1188 = vld [vmem:[#allocation10 + $0x190] sm:$0xff]
        %v1189 = vld [vmem:[#allocation10 + $0x198] sm:$0xff]
        %v1190 = vld [vmem:[#allocation10 + $0x1a0] sm:$0xff]
        %v1191 = vld [vmem:[#allocation10 + $0x1a8] sm:$0xff]
        %v1192 = vld [vmem:[#allocation10 + $0x1b0] sm:$0xff]
        %v1193 = vld [vmem:[#allocation10 + $0x1b8] sm:$0xff]
        %v1194 = vld [vmem:[#allocation10 + $0x1c0] sm:$0xff]
        %v1195 = vld [vmem:[#allocation10 + $0x1c8] sm:$0xff]
        %v1196 = vld [vmem:[#allocation10 + $0x1d0] sm:$0xff]
        %v1197 = vld [vmem:[#allocation10 + $0x1d8] sm:$0xff]
        %v1198 = vld [vmem:[#allocation10 + $0x1e0] sm:$0xff]
        %v1199 = vld [vmem:[#allocation10 + $0x1e8] sm:$0xff]
        %v1200 = vld [vmem:[#allocation10 + $0x1f0] sm:$0xff]
        %v1201 = vld [vmem:[#allocation10 + $0x1f8] sm:$0xff]
        %v1202 = vld [vmem:[#allocation10 + $0x200] sm:$0xff]
        %v1203 = vld [vmem:[#allocation10 + $0x208] sm:$0xff]
        %v1204 = vld [vmem:[#allocation10 + $0x210] sm:$0xff]
        %v1205 = vld [vmem:[#allocation10 + $0x218] sm:$0xff]
        %v1206 = vld [vmem:[#allocation10 + $0x220] sm:$0xff]
        %v1207 = vld [vmem:[#allocation10 + $0x228] sm:$0xff]
        %v1208 = vld [vmem:[#allocation10 + $0x230] sm:$0xff]
        %v1209 = vld [vmem:[#allocation10 + $0x238] sm:$0xff]
        %v1210 = vld [vmem:[#allocation10 + $0x240] sm:$0xff]
        %v1211 = vld [vmem:[#allocation10 + $0x248] sm:$0xff]
        %v1212 = vld [vmem:[#allocation10 + $0x250] sm:$0xff]
        %v1213 = vld [vmem:[#allocation10 + $0x258] sm:$0xff]
        %v1214 = vld [vmem:[#allocation10 + $0x260] sm:$0xff]
        %v1215 = vld [vmem:[#allocation10 + $0x268] sm:$0xff]
        %v1216 = vld [vmem:[#allocation10 + $0x270] sm:$0xff]
        %v1217 = vld [vmem:[#allocation10 + $0x278] sm:$0xff]
        %v1218 = vld [vmem:[#allocation10 + $0x280] sm:$0xff]
        %v1219 = vld [vmem:[#allocation10 + $0x288] sm:$0xff]
        %v1220 = vld [vmem:[#allocation10 + $0x290] sm:$0xff]
        %v1221 = vld [vmem:[#allocation10 + $0x298] sm:$0xff]
        %v1222 = vld [vmem:[#allocation10 + $0x2a0] sm:$0xff]
        %v1223 = vld [vmem:[#allocation10 + $0x2a8] sm:$0xff]
        %v1224 = vld [vmem:[#allocation10 + $0x2b0] sm:$0xff]
        %v1225 = vld [vmem:[#allocation10 + $0x2b8] sm:$0xff]
        %v1226 = vld [vmem:[#allocation10 + $0x2c0] sm:$0xff]
        %v1227 = vld [vmem:[#allocation10 + $0x2c8] sm:$0xff]
        %v1228 = vld [vmem:[#allocation10 + $0x2d0] sm:$0xff]
        %v1229 = vld [vmem:[#allocation10 + $0x2d8] sm:$0xff]
        %v1230 = vld [vmem:[#allocation10 + $0x2e0] sm:$0xff]
        %v1231 = vld [vmem:[#allocation10 + $0x2e8] sm:$0xff]
        %v1232 = vld [vmem:[#allocation10 + $0x2f0] sm:$0xff]
        %v1233 = vld [vmem:[#allocation10 + $0x2f8] sm:$0xff]
        %v1234 = vld [vmem:[#allocation10 + $0x300] sm:$0xff]
        %v1235 = vld [vmem:[#allocation10 + $0x308] sm:$0xff]
        %v1236 = vld [vmem:[#allocation10 + $0x310] sm:$0xff]
        %v1237 = vld [vmem:[#allocation10 + $0x318] sm:$0xff]
        %v1238 = vld [vmem:[#allocation10 + $0x320] sm:$0xff]
        %v1239 = vld [vmem:[#allocation10 + $0x328] sm:$0xff]
        %v1240 = vld [vmem:[#allocation10 + $0x330] sm:$0xff]
        %v1241 = vld [vmem:[#allocation10 + $0x338] sm:$0xff]
        %v1242 = vld [vmem:[#allocation10 + $0x340] sm:$0xff]
        %v1243 = vld [vmem:[#allocation10 + $0x348] sm:$0xff]
        %v1244 = vld [vmem:[#allocation10 + $0x350] sm:$0xff]
        %v1245 = vld [vmem:[#allocation10 + $0x358] sm:$0xff]
        %v1246 = vld [vmem:[#allocation10 + $0x360] sm:$0xff]
        %v1247 = vld [vmem:[#allocation10 + $0x368] sm:$0xff]
        %v1248 = vld [vmem:[#allocation10 + $0x370] sm:$0xff]
        %v1249 = vld [vmem:[#allocation10 + $0x378] sm:$0xff]
        %v1250 = vld [vmem:[#allocation10 + $0x380] sm:$0xff]
        %v1251 = vld [vmem:[#allocation10 + $0x388] sm:$0xff]
        %v1252 = vld [vmem:[#allocation10 + $0x390] sm:$0xff]
        %v1253 = vld [vmem:[#allocation10 + $0x398] sm:$0xff]
        %v1254 = vld [vmem:[#allocation10 + $0x3a0] sm:$0xff]
        %v1255 = vld [vmem:[#allocation10 + $0x3a8] sm:$0xff]
        %v1256 = vld [vmem:[#allocation10 + $0x3b0] sm:$0xff]
        %v1257 = vld [vmem:[#allocation10 + $0x3b8] sm:$0xff]
        %v1258 = vld [vmem:[#allocation10 + $0x3c0] sm:$0xff]
        %v1259 = vld [vmem:[#allocation10 + $0x3c8] sm:$0xff]
        %v1260 = vld [vmem:[#allocation10 + $0x3d0] sm:$0xff]
        %v1261 = vld [vmem:[#allocation10 + $0x3d8] sm:$0xff]
        %v1262 = vld [vmem:[#allocation10 + $0x3e0] sm:$0xff]
        %v1263 = vld [vmem:[#allocation10 + $0x3e8] sm:$0xff]
        %v1264 = vld [vmem:[#allocation10 + $0x3f0] sm:$0xff]
        %v1265 = vld [vmem:[#allocation10 + $0x3f8] sm:$0xff]
        %v1266 = vld [vmem:[#allocation11] sm:$0xff]
        %v1268 = vperm.slane %v1266, 0
        %v1269 = vperm.slane %v1266, 1
        %v1270 = vperm.slane %v1266, 2
        %v1271 = vperm.slane %v1266, 3
        %v1272 = vperm.slane %v1266, 4
        %v1273 = vperm.slane %v1266, 5
        %v1274 = vperm.slane %v1266, 6
        %v1275 = vperm.slane %v1266, 7
        %v1412 = vunpack.c.l.b16 %v1138
        %v1413 = vunpack.c.h.b16 %v1138
        %v1414 = vunpack.c.l.b16 %v1139
        %v1415 = vunpack.c.h.b16 %v1139
        %v1416 = vunpack.c.l.b16 %v1140
        %v1417 = vunpack.c.h.b16 %v1140
        %v1418 = vunpack.c.l.b16 %v1141
        %v1419 = vunpack.c.h.b16 %v1141
        %v1420 = vunpack.c.l.b16 %v1142
        %v1421 = vunpack.c.h.b16 %v1142
        %v1422 = vunpack.c.l.b16 %v1143
        %v1423 = vunpack.c.h.b16 %v1143
        %v1424 = vunpack.c.l.b16 %v1144
        %v1425 = vunpack.c.h.b16 %v1144
        %v1426 = vunpack.c.l.b16 %v1145
        %v1427 = vunpack.c.h.b16 %v1145
        %v1428 = vunpack.c.l.b16 %v1146
        %v1429 = vunpack.c.h.b16 %v1146
        %v1430 = vunpack.c.l.b16 %v1147
        %v1431 = vunpack.c.h.b16 %v1147
        %v1432 = vunpack.c.l.b16 %v1148
        %v1433 = vunpack.c.h.b16 %v1148
        %v1434 = vunpack.c.l.b16 %v1149
        %v1435 = vunpack.c.h.b16 %v1149
        %v1436 = vunpack.c.l.b16 %v1150
        %v1437 = vunpack.c.h.b16 %v1150
        %v1438 = vunpack.c.l.b16 %v1151
        %v1439 = vunpack.c.h.b16 %v1151
        %v1440 = vunpack.c.l.b16 %v1152
        %v1441 = vunpack.c.h.b16 %v1152
        %v1442 = vunpack.c.l.b16 %v1153
        %v1443 = vunpack.c.h.b16 %v1153
        %v1444 = vunpack.c.l.b16 %v1154
        %v1445 = vunpack.c.h.b16 %v1154
        %v1446 = vunpack.c.l.b16 %v1155
        %v1447 = vunpack.c.h.b16 %v1155
        %v1448 = vunpack.c.l.b16 %v1156
        %v1449 = vunpack.c.h.b16 %v1156
        %v1450 = vunpack.c.l.b16 %v1157
        %v1451 = vunpack.c.h.b16 %v1157
        %v1452 = vunpack.c.l.b16 %v1158
        %v1453 = vunpack.c.h.b16 %v1158
        %v1454 = vunpack.c.l.b16 %v1159
        %v1455 = vunpack.c.h.b16 %v1159
        %v1456 = vunpack.c.l.b16 %v1160
        %v1457 = vunpack.c.h.b16 %v1160
        %v1458 = vunpack.c.l.b16 %v1161
        %v1459 = vunpack.c.h.b16 %v1161
        %v1460 = vunpack.c.l.b16 %v1162
        %v1461 = vunpack.c.h.b16 %v1162
        %v1462 = vunpack.c.l.b16 %v1163
        %v1463 = vunpack.c.h.b16 %v1163
        %v1464 = vunpack.c.l.b16 %v1164
        %v1465 = vunpack.c.h.b16 %v1164
        %v1466 = vunpack.c.l.b16 %v1165
        %v1467 = vunpack.c.h.b16 %v1165
        %v1468 = vunpack.c.l.b16 %v1166
        %v1469 = vunpack.c.h.b16 %v1166
        %v1470 = vunpack.c.l.b16 %v1167
        %v1471 = vunpack.c.h.b16 %v1167
        %v1472 = vunpack.c.l.b16 %v1168
        %v1473 = vunpack.c.h.b16 %v1168
        %v1474 = vunpack.c.l.b16 %v1169
        %v1475 = vunpack.c.h.b16 %v1169
        %v1476 = vunpack.c.l.b16 %v1170
        %v1477 = vunpack.c.h.b16 %v1170
        %v1478 = vunpack.c.l.b16 %v1171
        %v1479 = vunpack.c.h.b16 %v1171
        %v1480 = vunpack.c.l.b16 %v1172
        %v1481 = vunpack.c.h.b16 %v1172
        %v1482 = vunpack.c.l.b16 %v1173
        %v1483 = vunpack.c.h.b16 %v1173
        %v1484 = vunpack.c.l.b16 %v1174
        %v1485 = vunpack.c.h.b16 %v1174
        %v1486 = vunpack.c.l.b16 %v1175
        %v1487 = vunpack.c.h.b16 %v1175
        %v1488 = vunpack.c.l.b16 %v1176
        %v1489 = vunpack.c.h.b16 %v1176
        %v1490 = vunpack.c.l.b16 %v1177
        %v1491 = vunpack.c.h.b16 %v1177
        %v1492 = vunpack.c.l.b16 %v1178
        %v1493 = vunpack.c.h.b16 %v1178
        %v1494 = vunpack.c.l.b16 %v1179
        %v1495 = vunpack.c.h.b16 %v1179
        %v1496 = vunpack.c.l.b16 %v1180
        %v1497 = vunpack.c.h.b16 %v1180
        %v1498 = vunpack.c.l.b16 %v1181
        %v1499 = vunpack.c.h.b16 %v1181
        %v1500 = vunpack.c.l.b16 %v1182
        %v1501 = vunpack.c.h.b16 %v1182
        %v1502 = vunpack.c.l.b16 %v1183
        %v1503 = vunpack.c.h.b16 %v1183
        %v1504 = vunpack.c.l.b16 %v1184
        %v1505 = vunpack.c.h.b16 %v1184
        %v1506 = vunpack.c.l.b16 %v1185
        %v1507 = vunpack.c.h.b16 %v1185
        %v1508 = vunpack.c.l.b16 %v1186
        %v1509 = vunpack.c.h.b16 %v1186
        %v1510 = vunpack.c.l.b16 %v1187
        %v1511 = vunpack.c.h.b16 %v1187
        %v1512 = vunpack.c.l.b16 %v1188
        %v1513 = vunpack.c.h.b16 %v1188
        %v1514 = vunpack.c.l.b16 %v1189
        %v1515 = vunpack.c.h.b16 %v1189
        %v1516 = vunpack.c.l.b16 %v1190
        %v1517 = vunpack.c.h.b16 %v1190
        %v1518 = vunpack.c.l.b16 %v1191
        %v1519 = vunpack.c.h.b16 %v1191
        %v1520 = vunpack.c.l.b16 %v1192
        %v1521 = vunpack.c.h.b16 %v1192
        %v1522 = vunpack.c.l.b16 %v1193
        %v1523 = vunpack.c.h.b16 %v1193
        %v1524 = vunpack.c.l.b16 %v1194
        %v1525 = vunpack.c.h.b16 %v1194
        %v1526 = vunpack.c.l.b16 %v1195
        %v1527 = vunpack.c.h.b16 %v1195
        %v1528 = vunpack.c.l.b16 %v1196
        %v1529 = vunpack.c.h.b16 %v1196
        %v1530 = vunpack.c.l.b16 %v1197
        %v1531 = vunpack.c.h.b16 %v1197
        %v1532 = vunpack.c.l.b16 %v1198
        %v1533 = vunpack.c.h.b16 %v1198
        %v1534 = vunpack.c.l.b16 %v1199
        %v1535 = vunpack.c.h.b16 %v1199
        %v1536 = vunpack.c.l.b16 %v1200
        %v1537 = vunpack.c.h.b16 %v1200
        %v1538 = vunpack.c.l.b16 %v1201
        %v1539 = vunpack.c.h.b16 %v1201
        %v1540 = vunpack.c.l.b16 %v1202
        %v1541 = vunpack.c.h.b16 %v1202
        %v1542 = vunpack.c.l.b16 %v1203
        %v1543 = vunpack.c.h.b16 %v1203
        %v1544 = vunpack.c.l.b16 %v1204
        %v1545 = vunpack.c.h.b16 %v1204
        %v1546 = vunpack.c.l.b16 %v1205
        %v1547 = vunpack.c.h.b16 %v1205
        %v1548 = vunpack.c.l.b16 %v1206
        %v1549 = vunpack.c.h.b16 %v1206
        %v1550 = vunpack.c.l.b16 %v1207
        %v1551 = vunpack.c.h.b16 %v1207
        %v1552 = vunpack.c.l.b16 %v1208
        %v1553 = vunpack.c.h.b16 %v1208
        %v1554 = vunpack.c.l.b16 %v1209
        %v1555 = vunpack.c.h.b16 %v1209
        %v1556 = vunpack.c.l.b16 %v1210
        %v1557 = vunpack.c.h.b16 %v1210
        %v1558 = vunpack.c.l.b16 %v1211
        %v1559 = vunpack.c.h.b16 %v1211
        %v1560 = vunpack.c.l.b16 %v1212
        %v1561 = vunpack.c.h.b16 %v1212
        %v1562 = vunpack.c.l.b16 %v1213
        %v1563 = vunpack.c.h.b16 %v1213
        %v1564 = vunpack.c.l.b16 %v1214
        %v1565 = vunpack.c.h.b16 %v1214
        %v1566 = vunpack.c.l.b16 %v1215
        %v1567 = vunpack.c.h.b16 %v1215
        %v1568 = vunpack.c.l.b16 %v1216
        %v1569 = vunpack.c.h.b16 %v1216
        %v1570 = vunpack.c.l.b16 %v1217
        %v1571 = vunpack.c.h.b16 %v1217
        %v1572 = vunpack.c.l.b16 %v1218
        %v1573 = vunpack.c.h.b16 %v1218
        %v1574 = vunpack.c.l.b16 %v1219
        %v1575 = vunpack.c.h.b16 %v1219
        %v1576 = vunpack.c.l.b16 %v1220
        %v1577 = vunpack.c.h.b16 %v1220
        %v1578 = vunpack.c.l.b16 %v1221
        %v1579 = vunpack.c.h.b16 %v1221
        %v1580 = vunpack.c.l.b16 %v1222
        %v1581 = vunpack.c.h.b16 %v1222
        %v1582 = vunpack.c.l.b16 %v1223
        %v1583 = vunpack.c.h.b16 %v1223
        %v1584 = vunpack.c.l.b16 %v1224
        %v1585 = vunpack.c.h.b16 %v1224
        %v1586 = vunpack.c.l.b16 %v1225
        %v1587 = vunpack.c.h.b16 %v1225
        %v1588 = vunpack.c.l.b16 %v1226
        %v1589 = vunpack.c.h.b16 %v1226
        %v1590 = vunpack.c.l.b16 %v1227
        %v1591 = vunpack.c.h.b16 %v1227
        %v1592 = vunpack.c.l.b16 %v1228
        %v1593 = vunpack.c.h.b16 %v1228
        %v1594 = vunpack.c.l.b16 %v1229
        %v1595 = vunpack.c.h.b16 %v1229
        %v1596 = vunpack.c.l.b16 %v1230
        %v1597 = vunpack.c.h.b16 %v1230
        %v1598 = vunpack.c.l.b16 %v1231
        %v1599 = vunpack.c.h.b16 %v1231
        %v1600 = vunpack.c.l.b16 %v1232
        %v1601 = vunpack.c.h.b16 %v1232
        %v1602 = vunpack.c.l.b16 %v1233
        %v1603 = vunpack.c.h.b16 %v1233
        %v1604 = vunpack.c.l.b16 %v1234
        %v1605 = vunpack.c.h.b16 %v1234
        %v1606 = vunpack.c.l.b16 %v1235
        %v1607 = vunpack.c.h.b16 %v1235
        %v1608 = vunpack.c.l.b16 %v1236
        %v1609 = vunpack.c.h.b16 %v1236
        %v1610 = vunpack.c.l.b16 %v1237
        %v1611 = vunpack.c.h.b16 %v1237
        %v1612 = vunpack.c.l.b16 %v1238
        %v1613 = vunpack.c.h.b16 %v1238
        %v1614 = vunpack.c.l.b16 %v1239
        %v1615 = vunpack.c.h.b16 %v1239
        %v1616 = vunpack.c.l.b16 %v1240
        %v1617 = vunpack.c.h.b16 %v1240
        %v1618 = vunpack.c.l.b16 %v1241
        %v1619 = vunpack.c.h.b16 %v1241
        %v1620 = vunpack.c.l.b16 %v1242
        %v1621 = vunpack.c.h.b16 %v1242
        %v1622 = vunpack.c.l.b16 %v1243
        %v1623 = vunpack.c.h.b16 %v1243
        %v1624 = vunpack.c.l.b16 %v1244
        %v1625 = vunpack.c.h.b16 %v1244
        %v1626 = vunpack.c.l.b16 %v1245
        %v1627 = vunpack.c.h.b16 %v1245
        %v1628 = vunpack.c.l.b16 %v1246
        %v1629 = vunpack.c.h.b16 %v1246
        %v1630 = vunpack.c.l.b16 %v1247
        %v1631 = vunpack.c.h.b16 %v1247
        %v1632 = vunpack.c.l.b16 %v1248
        %v1633 = vunpack.c.h.b16 %v1248
        %v1634 = vunpack.c.l.b16 %v1249
        %v1635 = vunpack.c.h.b16 %v1249
        %v1636 = vunpack.c.l.b16 %v1250
        %v1637 = vunpack.c.h.b16 %v1250
        %v1638 = vunpack.c.l.b16 %v1251
        %v1639 = vunpack.c.h.b16 %v1251
        %v1640 = vunpack.c.l.b16 %v1252
        %v1641 = vunpack.c.h.b16 %v1252
        %v1642 = vunpack.c.l.b16 %v1253
        %v1643 = vunpack.c.h.b16 %v1253
        %v1644 = vunpack.c.l.b16 %v1254
        %v1645 = vunpack.c.h.b16 %v1254
        %v1646 = vunpack.c.l.b16 %v1255
        %v1647 = vunpack.c.h.b16 %v1255
        %v1648 = vunpack.c.l.b16 %v1256
        %v1649 = vunpack.c.h.b16 %v1256
        %v1650 = vunpack.c.l.b16 %v1257
        %v1651 = vunpack.c.h.b16 %v1257
        %v1652 = vunpack.c.l.b16 %v1258
        %v1653 = vunpack.c.h.b16 %v1258
        %v1654 = vunpack.c.l.b16 %v1259
        %v1655 = vunpack.c.h.b16 %v1259
        %v1656 = vunpack.c.l.b16 %v1260
        %v1657 = vunpack.c.h.b16 %v1260
        %v1658 = vunpack.c.l.b16 %v1261
        %v1659 = vunpack.c.h.b16 %v1261
        %v1660 = vunpack.c.l.b16 %v1262
        %v1661 = vunpack.c.h.b16 %v1262
        %v1662 = vunpack.c.l.b16 %v1263
        %v1663 = vunpack.c.h.b16 %v1263
        %v1664 = vunpack.c.l.b16 %v1264
        %v1665 = vunpack.c.h.b16 %v1264
        %v1666 = vunpack.c.l.b16 %v1265
        %v1667 = vunpack.c.h.b16 %v1265
        %v1668 = vpack.c.b16 %v1420, %v1412
        %v1669 = vpack.c.b16 %v1421, %v1413
        %v1670 = vpack.c.b16 %v1422, %v1414
        %v1671 = vpack.c.b16 %v1423, %v1415
        %v1672 = vpack.c.b16 %v1424, %v1416
        %v1673 = vpack.c.b16 %v1425, %v1417
        %v1674 = vpack.c.b16 %v1426, %v1418
        %v1675 = vpack.c.b16 %v1427, %v1419
        %v1676 = vpack.c.b16 %v1436, %v1428
        %v1677 = vpack.c.b16 %v1437, %v1429
        %v1678 = vpack.c.b16 %v1438, %v1430
        %v1679 = vpack.c.b16 %v1439, %v1431
        %v1680 = vpack.c.b16 %v1440, %v1432
        %v1681 = vpack.c.b16 %v1441, %v1433
        %v1682 = vpack.c.b16 %v1442, %v1434
        %v1683 = vpack.c.b16 %v1443, %v1435
        %v1684 = vpack.c.b16 %v1452, %v1444
        %v1685 = vpack.c.b16 %v1453, %v1445
        %v1686 = vpack.c.b16 %v1454, %v1446
        %v1687 = vpack.c.b16 %v1455, %v1447
        %v1688 = vpack.c.b16 %v1456, %v1448
        %v1689 = vpack.c.b16 %v1457, %v1449
        %v1690 = vpack.c.b16 %v1458, %v1450
        %v1691 = vpack.c.b16 %v1459, %v1451
        %v1692 = vpack.c.b16 %v1468, %v1460
        %v1693 = vpack.c.b16 %v1469, %v1461
        %v1694 = vpack.c.b16 %v1470, %v1462
        %v1695 = vpack.c.b16 %v1471, %v1463
        %v1696 = vpack.c.b16 %v1472, %v1464
        %v1697 = vpack.c.b16 %v1473, %v1465
        %v1698 = vpack.c.b16 %v1474, %v1466
        %v1699 = vpack.c.b16 %v1475, %v1467
        %v1700 = vpack.c.b16 %v1484, %v1476
        %v1701 = vpack.c.b16 %v1485, %v1477
        %v1702 = vpack.c.b16 %v1486, %v1478
        %v1703 = vpack.c.b16 %v1487, %v1479
        %v1704 = vpack.c.b16 %v1488, %v1480
        %v1705 = vpack.c.b16 %v1489, %v1481
        %v1706 = vpack.c.b16 %v1490, %v1482
        %v1707 = vpack.c.b16 %v1491, %v1483
        %v1708 = vpack.c.b16 %v1500, %v1492
        %v1709 = vpack.c.b16 %v1501, %v1493
        %v1710 = vpack.c.b16 %v1502, %v1494
        %v1711 = vpack.c.b16 %v1503, %v1495
        %v1712 = vpack.c.b16 %v1504, %v1496
        %v1713 = vpack.c.b16 %v1505, %v1497
        %v1714 = vpack.c.b16 %v1506, %v1498
        %v1715 = vpack.c.b16 %v1507, %v1499
        %v1716 = vpack.c.b16 %v1516, %v1508
        %v1717 = vpack.c.b16 %v1517, %v1509
        %v1718 = vpack.c.b16 %v1518, %v1510
        %v1719 = vpack.c.b16 %v1519, %v1511
        %v1720 = vpack.c.b16 %v1520, %v1512
        %v1721 = vpack.c.b16 %v1521, %v1513
        %v1722 = vpack.c.b16 %v1522, %v1514
        %v1723 = vpack.c.b16 %v1523, %v1515
        %v1724 = vpack.c.b16 %v1532, %v1524
        %v1725 = vpack.c.b16 %v1533, %v1525
        %v1726 = vpack.c.b16 %v1534, %v1526
        %v1727 = vpack.c.b16 %v1535, %v1527
        %v1728 = vpack.c.b16 %v1536, %v1528
        %v1729 = vpack.c.b16 %v1537, %v1529
        %v1730 = vpack.c.b16 %v1538, %v1530
        %v1731 = vpack.c.b16 %v1539, %v1531
        %v1732 = vpack.c.b16 %v1548, %v1540
        %v1733 = vpack.c.b16 %v1549, %v1541
        %v1734 = vpack.c.b16 %v1550, %v1542
        %v1735 = vpack.c.b16 %v1551, %v1543
        %v1736 = vpack.c.b16 %v1552, %v1544
        %v1737 = vpack.c.b16 %v1553, %v1545
        %v1738 = vpack.c.b16 %v1554, %v1546
        %v1739 = vpack.c.b16 %v1555, %v1547
        %v1740 = vpack.c.b16 %v1564, %v1556
        %v1741 = vpack.c.b16 %v1565, %v1557
        %v1742 = vpack.c.b16 %v1566, %v1558
        %v1743 = vpack.c.b16 %v1567, %v1559
        %v1744 = vpack.c.b16 %v1568, %v1560
        %v1745 = vpack.c.b16 %v1569, %v1561
        %v1746 = vpack.c.b16 %v1570, %v1562
        %v1747 = vpack.c.b16 %v1571, %v1563
        %v1748 = vpack.c.b16 %v1580, %v1572
        %v1749 = vpack.c.b16 %v1581, %v1573
        %v1750 = vpack.c.b16 %v1582, %v1574
        %v1751 = vpack.c.b16 %v1583, %v1575
        %v1752 = vpack.c.b16 %v1584, %v1576
        %v1753 = vpack.c.b16 %v1585, %v1577
        %v1754 = vpack.c.b16 %v1586, %v1578
        %v1755 = vpack.c.b16 %v1587, %v1579
        %v1756 = vpack.c.b16 %v1596, %v1588
        %v1757 = vpack.c.b16 %v1597, %v1589
        %v1758 = vpack.c.b16 %v1598, %v1590
        %v1759 = vpack.c.b16 %v1599, %v1591
        %v1760 = vpack.c.b16 %v1600, %v1592
        %v1761 = vpack.c.b16 %v1601, %v1593
        %v1762 = vpack.c.b16 %v1602, %v1594
        %v1763 = vpack.c.b16 %v1603, %v1595
        %v1764 = vpack.c.b16 %v1612, %v1604
        %v1765 = vpack.c.b16 %v1613, %v1605
        %v1766 = vpack.c.b16 %v1614, %v1606
        %v1767 = vpack.c.b16 %v1615, %v1607
        %v1768 = vpack.c.b16 %v1616, %v1608
        %v1769 = vpack.c.b16 %v1617, %v1609
        %v1770 = vpack.c.b16 %v1618, %v1610
        %v1771 = vpack.c.b16 %v1619, %v1611
        %v1772 = vpack.c.b16 %v1628, %v1620
        %v1773 = vpack.c.b16 %v1629, %v1621
        %v1774 = vpack.c.b16 %v1630, %v1622
        %v1775 = vpack.c.b16 %v1631, %v1623
        %v1776 = vpack.c.b16 %v1632, %v1624
        %v1777 = vpack.c.b16 %v1633, %v1625
        %v1778 = vpack.c.b16 %v1634, %v1626
        %v1779 = vpack.c.b16 %v1635, %v1627
        %v1780 = vpack.c.b16 %v1644, %v1636
        %v1781 = vpack.c.b16 %v1645, %v1637
        %v1782 = vpack.c.b16 %v1646, %v1638
        %v1783 = vpack.c.b16 %v1647, %v1639
        %v1784 = vpack.c.b16 %v1648, %v1640
        %v1785 = vpack.c.b16 %v1649, %v1641
        %v1786 = vpack.c.b16 %v1650, %v1642
        %v1787 = vpack.c.b16 %v1651, %v1643
        %v1788 = vpack.c.b16 %v1660, %v1652
        %v1789 = vpack.c.b16 %v1661, %v1653
        %v1790 = vpack.c.b16 %v1662, %v1654
        %v1791 = vpack.c.b16 %v1663, %v1655
        %v1792 = vpack.c.b16 %v1664, %v1656
        %v1793 = vpack.c.b16 %v1665, %v1657
        %v1794 = vpack.c.b16 %v1666, %v1658
        %v1795 = vpack.c.b16 %v1667, %v1659
        %1924 = vmatpush.bf16.msra.mxu0 %v1724
        %1925 = vmatpush.bf16.msra.mxu0 %v1716
        %1926 = vmatpush.bf16.msra.mxu0 %v1708
        %1927 = vmatpush.bf16.msra.mxu0 %v1700
        %1928 = vmatpush.bf16.msra.mxu0 %v1692
        %1929 = vmatpush.bf16.msra.mxu0 %v1684
        %1930 = vmatpush.bf16.msra.mxu0 %v1676
        %1931 = vmatpush.bf16.msra.mxu0 %v1668
        %1932 = vmatmul.bf16.gmra.mxu0 %v1126
        %v1933 = vpop.f32.mrf.mxu0
        %v1934 = vadd.f32 %v1268, %v1933
        %v1935 = vpop.f32.mrf.mxu0
        %v1936 = vadd.f32 %v1268, %v1935
        %1937 = vmatmul.bf16.gmra.mxu0 %v1128
        %v1938 = vpop.f32.mrf.mxu0
        %v1939 = vadd.f32 %v1268, %v1938
        %v1940 = vpop.f32.mrf.mxu0
        %v1941 = vadd.f32 %v1268, %v1940
        %1942 = vmatmul.bf16.gmra.mxu0 %v1130
        %v1943 = vpop.f32.mrf.mxu0
        %v1944 = vadd.f32 %v1268, %v1943
        %v1945 = vpop.f32.mrf.mxu0
        %v1946 = vadd.f32 %v1268, %v1945
        %1947 = vmatmul.bf16.gmra.mxu0 %v1132
        %v1948 = vpop.f32.mrf.mxu0
        %v1949 = vadd.f32 %v1268, %v1948
        %v1950 = vpop.f32.mrf.mxu0
        %v1951 = vadd.f32 %v1268, %v1950
        %1952 = vmatmul.bf16.gmra.mxu0 %v1134
        %v1953 = vpop.f32.mrf.mxu0
        %v1954 = vadd.f32 %v1268, %v1953
        %v1955 = vpop.f32.mrf.mxu0
        %v1956 = vadd.f32 %v1268, %v1955
        %1957 = vmatmul.bf16.gmra.mxu0 %v1136
        %v1958 = vpop.f32.mrf.mxu0
        %v1959 = vadd.f32 %v1268, %v1958
        %v1960 = vpop.f32.mrf.mxu0
        %v1961 = vadd.f32 %v1268, %v1960
        %1962 = vdwg.mxu0
        %1963 = vmatpush.bf16.msra.mxu0 %v1788
        %1964 = vmatpush.bf16.msra.mxu0 %v1780
        %1965 = vmatpush.bf16.msra.mxu0 %v1772
        %1966 = vmatpush.bf16.msra.mxu0 %v1764
        %1967 = vmatpush.bf16.msra.mxu0 %v1756
        %1968 = vmatpush.bf16.msra.mxu0 %v1748
        %1969 = vmatpush.bf16.msra.mxu0 %v1740
        %1970 = vmatpush.bf16.msra.mxu0 %v1732
        %1971 = vmatmul.bf16.gmra.mxu0 %v1127
        %v1972 = vpop.f32.mrf.mxu0
        %v1973 = vadd.f32 %v1934, %v1972
        %v1974 = vpop.f32.mrf.mxu0
        %v1975 = vadd.f32 %v1936, %v1974
        %1976 = vmatmul.bf16.gmra.mxu0 %v1129
        %v1977 = vpop.f32.mrf.mxu0
        %v1978 = vadd.f32 %v1939, %v1977
        %v1979 = vpop.f32.mrf.mxu0
        %v1980 = vadd.f32 %v1941, %v1979
        %1981 = vmatmul.bf16.gmra.mxu0 %v1131
        %v1982 = vpop.f32.mrf.mxu0
        %v1983 = vadd.f32 %v1944, %v1982
        %v1984 = vpop.f32.mrf.mxu0
        %v1985 = vadd.f32 %v1946, %v1984
        %1986 = vmatmul.bf16.gmra.mxu0 %v1133
        %v1987 = vpop.f32.mrf.mxu0
        %v1988 = vadd.f32 %v1949, %v1987
        %v1989 = vpop.f32.mrf.mxu0
        %v1990 = vadd.f32 %v1951, %v1989
        %1991 = vmatmul.bf16.gmra.mxu0 %v1135
        %v1992 = vpop.f32.mrf.mxu0
        %v1993 = vadd.f32 %v1954, %v1992
        %v1994 = vpop.f32.mrf.mxu0
        %v1995 = vadd.f32 %v1956, %v1994
        %1996 = vmatmul.bf16.gmra.mxu0 %v1137
        %v1997 = vpop.f32.mrf.mxu0
        %v1998 = vadd.f32 %v1959, %v1997
        %v1999 = vpop.f32.mrf.mxu0
        %v2000 = vadd.f32 %v1961, %v1999
        %2001 = vdwg.mxu0
        %2002 = vmatpush.bf16.msra.mxu0 %v1725
        %2003 = vmatpush.bf16.msra.mxu0 %v1717
        %2004 = vmatpush.bf16.msra.mxu0 %v1709
        %2005 = vmatpush.bf16.msra.mxu0 %v1701
        %2006 = vmatpush.bf16.msra.mxu0 %v1693
        %2007 = vmatpush.bf16.msra.mxu0 %v1685
        %2008 = vmatpush.bf16.msra.mxu0 %v1677
        %2009 = vmatpush.bf16.msra.mxu0 %v1669
        %2010 = vmatmul.bf16.gmra.mxu0 %v1126
        %v2011 = vpop.f32.mrf.mxu0
        %v2012 = vadd.f32 %v1269, %v2011
        %v2013 = vpop.f32.mrf.mxu0
        %v2014 = vadd.f32 %v1269, %v2013
        %2015 = vmatmul.bf16.gmra.mxu0 %v1128
        %v2016 = vpop.f32.mrf.mxu0
        %v2017 = vadd.f32 %v1269, %v2016
        %v2018 = vpop.f32.mrf.mxu0
        %v2019 = vadd.f32 %v1269, %v2018
        %2020 = vmatmul.bf16.gmra.mxu0 %v1130
        %v2021 = vpop.f32.mrf.mxu0
        %v2022 = vadd.f32 %v1269, %v2021
        %v2023 = vpop.f32.mrf.mxu0
        %v2024 = vadd.f32 %v1269, %v2023
        %2025 = vmatmul.bf16.gmra.mxu0 %v1132
        %v2026 = vpop.f32.mrf.mxu0
        %v2027 = vadd.f32 %v1269, %v2026
        %v2028 = vpop.f32.mrf.mxu0
        %v2029 = vadd.f32 %v1269, %v2028
        %2030 = vmatmul.bf16.gmra.mxu0 %v1134
        %v2031 = vpop.f32.mrf.mxu0
        %v2032 = vadd.f32 %v1269, %v2031
        %v2033 = vpop.f32.mrf.mxu0
        %v2034 = vadd.f32 %v1269, %v2033
        %2035 = vmatmul.bf16.gmra.mxu0 %v1136
        %v2036 = vpop.f32.mrf.mxu0
        %v2037 = vadd.f32 %v1269, %v2036
        %v2038 = vpop.f32.mrf.mxu0
        %v2039 = vadd.f32 %v1269, %v2038
        %2040 = vdwg.mxu0
        %2041 = vmatpush.bf16.msra.mxu0 %v1789
        %2042 = vmatpush.bf16.msra.mxu0 %v1781
        %2043 = vmatpush.bf16.msra.mxu0 %v1773
        %2044 = vmatpush.bf16.msra.mxu0 %v1765
        %2045 = vmatpush.bf16.msra.mxu0 %v1757
        %2046 = vmatpush.bf16.msra.mxu0 %v1749
        %2047 = vmatpush.bf16.msra.mxu0 %v1741
        %2048 = vmatpush.bf16.msra.mxu0 %v1733
        %2049 = vmatmul.bf16.gmra.mxu0 %v1127
        %v2050 = vpop.f32.mrf.mxu0
        %v2051 = vadd.f32 %v2012, %v2050
        %v2052 = vpop.f32.mrf.mxu0
        %v2053 = vadd.f32 %v2014, %v2052
        %2054 = vmatmul.bf16.gmra.mxu0 %v1129
        %v2055 = vpop.f32.mrf.mxu0
        %v2056 = vadd.f32 %v2017, %v2055
        %v2057 = vpop.f32.mrf.mxu0
        %v2058 = vadd.f32 %v2019, %v2057
        %2059 = vmatmul.bf16.gmra.mxu0 %v1131
        %v2060 = vpop.f32.mrf.mxu0
        %v2061 = vadd.f32 %v2022, %v2060
        %v2062 = vpop.f32.mrf.mxu0
        %v2063 = vadd.f32 %v2024, %v2062
        %2064 = vmatmul.bf16.gmra.mxu0 %v1133
        %v2065 = vpop.f32.mrf.mxu0
        %v2066 = vadd.f32 %v2027, %v2065
        %v2067 = vpop.f32.mrf.mxu0
        %v2068 = vadd.f32 %v2029, %v2067
        %2069 = vmatmul.bf16.gmra.mxu0 %v1135
        %v2070 = vpop.f32.mrf.mxu0
        %v2071 = vadd.f32 %v2032, %v2070
        %v2072 = vpop.f32.mrf.mxu0
        %v2073 = vadd.f32 %v2034, %v2072
        %2074 = vmatmul.bf16.gmra.mxu0 %v1137
        %v2075 = vpop.f32.mrf.mxu0
        %v2076 = vadd.f32 %v2037, %v2075
        %v2077 = vpop.f32.mrf.mxu0
        %v2078 = vadd.f32 %v2039, %v2077
        %2079 = vdwg.mxu0
        %2080 = vmatpush.bf16.msra.mxu0 %v1726
        %2081 = vmatpush.bf16.msra.mxu0 %v1718
        %2082 = vmatpush.bf16.msra.mxu0 %v1710
        %2083 = vmatpush.bf16.msra.mxu0 %v1702
        %2084 = vmatpush.bf16.msra.mxu0 %v1694
        %2085 = vmatpush.bf16.msra.mxu0 %v1686
        %2086 = vmatpush.bf16.msra.mxu0 %v1678
        %2087 = vmatpush.bf16.msra.mxu0 %v1670
        %2088 = vmatmul.bf16.gmra.mxu0 %v1126
        %v2089 = vpop.f32.mrf.mxu0
        %v2090 = vadd.f32 %v1270, %v2089
        %v2091 = vpop.f32.mrf.mxu0
        %v2092 = vadd.f32 %v1270, %v2091
        %2093 = vmatmul.bf16.gmra.mxu0 %v1128
        %v2094 = vpop.f32.mrf.mxu0
        %v2095 = vadd.f32 %v1270, %v2094
        %v2096 = vpop.f32.mrf.mxu0
        %v2097 = vadd.f32 %v1270, %v2096
        %2098 = vmatmul.bf16.gmra.mxu0 %v1130
        %v2099 = vpop.f32.mrf.mxu0
        %v2100 = vadd.f32 %v1270, %v2099
        %v2101 = vpop.f32.mrf.mxu0
        %v2102 = vadd.f32 %v1270, %v2101
        %2103 = vmatmul.bf16.gmra.mxu0 %v1132
        %v2104 = vpop.f32.mrf.mxu0
        %v2105 = vadd.f32 %v1270, %v2104
        %v2106 = vpop.f32.mrf.mxu0
        %v2107 = vadd.f32 %v1270, %v2106
        %2108 = vmatmul.bf16.gmra.mxu0 %v1134
        %v2109 = vpop.f32.mrf.mxu0
        %v2110 = vadd.f32 %v1270, %v2109
        %v2111 = vpop.f32.mrf.mxu0
        %v2112 = vadd.f32 %v1270, %v2111
        %2113 = vmatmul.bf16.gmra.mxu0 %v1136
        %v2114 = vpop.f32.mrf.mxu0
        %v2115 = vadd.f32 %v1270, %v2114
        %v2116 = vpop.f32.mrf.mxu0
        %v2117 = vadd.f32 %v1270, %v2116
        %2118 = vdwg.mxu0
        %2119 = vmatpush.bf16.msra.mxu0 %v1790
        %2120 = vmatpush.bf16.msra.mxu0 %v1782
        %2121 = vmatpush.bf16.msra.mxu0 %v1774
        %2122 = vmatpush.bf16.msra.mxu0 %v1766
        %2123 = vmatpush.bf16.msra.mxu0 %v1758
        %2124 = vmatpush.bf16.msra.mxu0 %v1750
        %2125 = vmatpush.bf16.msra.mxu0 %v1742
        %2126 = vmatpush.bf16.msra.mxu0 %v1734
        %2127 = vmatmul.bf16.gmra.mxu0 %v1127
        %v2128 = vpop.f32.mrf.mxu0
        %v2129 = vadd.f32 %v2090, %v2128
        %v2130 = vpop.f32.mrf.mxu0
        %v2131 = vadd.f32 %v2092, %v2130
        %2132 = vmatmul.bf16.gmra.mxu0 %v1129
        %v2133 = vpop.f32.mrf.mxu0
        %v2134 = vadd.f32 %v2095, %v2133
        %v2135 = vpop.f32.mrf.mxu0
        %v2136 = vadd.f32 %v2097, %v2135
        %2137 = vmatmul.bf16.gmra.mxu0 %v1131
        %v2138 = vpop.f32.mrf.mxu0
        %v2139 = vadd.f32 %v2100, %v2138
        %v2140 = vpop.f32.mrf.mxu0
        %v2141 = vadd.f32 %v2102, %v2140
        %2142 = vmatmul.bf16.gmra.mxu0 %v1133
        %v2143 = vpop.f32.mrf.mxu0
        %v2144 = vadd.f32 %v2105, %v2143
        %v2145 = vpop.f32.mrf.mxu0
        %v2146 = vadd.f32 %v2107, %v2145
        %2147 = vmatmul.bf16.gmra.mxu0 %v1135
        %v2148 = vpop.f32.mrf.mxu0
        %v2149 = vadd.f32 %v2110, %v2148
        %v2150 = vpop.f32.mrf.mxu0
        %v2151 = vadd.f32 %v2112, %v2150
        %2152 = vmatmul.bf16.gmra.mxu0 %v1137
        %v2153 = vpop.f32.mrf.mxu0
        %v2154 = vadd.f32 %v2115, %v2153
        %v2155 = vpop.f32.mrf.mxu0
        %v2156 = vadd.f32 %v2117, %v2155
        %2157 = vdwg.mxu0
        %2158 = vmatpush.bf16.msra.mxu0 %v1727
        %2159 = vmatpush.bf16.msra.mxu0 %v1719
        %2160 = vmatpush.bf16.msra.mxu0 %v1711
        %2161 = vmatpush.bf16.msra.mxu0 %v1703
        %2162 = vmatpush.bf16.msra.mxu0 %v1695
        %2163 = vmatpush.bf16.msra.mxu0 %v1687
        %2164 = vmatpush.bf16.msra.mxu0 %v1679
        %2165 = vmatpush.bf16.msra.mxu0 %v1671
        %2166 = vmatmul.bf16.gmra.mxu0 %v1126
        %v2167 = vpop.f32.mrf.mxu0
        %v2168 = vadd.f32 %v1271, %v2167
        %v2169 = vpop.f32.mrf.mxu0
        %v2170 = vadd.f32 %v1271, %v2169
        %2171 = vmatmul.bf16.gmra.mxu0 %v1128
        %v2172 = vpop.f32.mrf.mxu0
        %v2173 = vadd.f32 %v1271, %v2172
        %v2174 = vpop.f32.mrf.mxu0
        %v2175 = vadd.f32 %v1271, %v2174
        %2176 = vmatmul.bf16.gmra.mxu0 %v1130
        %v2177 = vpop.f32.mrf.mxu0
        %v2178 = vadd.f32 %v1271, %v2177
        %v2179 = vpop.f32.mrf.mxu0
        %v2180 = vadd.f32 %v1271, %v2179
        %2181 = vmatmul.bf16.gmra.mxu0 %v1132
        %v2182 = vpop.f32.mrf.mxu0
        %v2183 = vadd.f32 %v1271, %v2182
        %v2184 = vpop.f32.mrf.mxu0
        %v2185 = vadd.f32 %v1271, %v2184
        %2186 = vmatmul.bf16.gmra.mxu0 %v1134
        %v2187 = vpop.f32.mrf.mxu0
        %v2188 = vadd.f32 %v1271, %v2187
        %v2189 = vpop.f32.mrf.mxu0
        %v2190 = vadd.f32 %v1271, %v2189
        %2191 = vmatmul.bf16.gmra.mxu0 %v1136
        %v2192 = vpop.f32.mrf.mxu0
        %v2193 = vadd.f32 %v1271, %v2192
        %v2194 = vpop.f32.mrf.mxu0
        %v2195 = vadd.f32 %v1271, %v2194
        %2196 = vdwg.mxu0
        %2197 = vmatpush.bf16.msra.mxu0 %v1791
        %2198 = vmatpush.bf16.msra.mxu0 %v1783
        %2199 = vmatpush.bf16.msra.mxu0 %v1775
        %2200 = vmatpush.bf16.msra.mxu0 %v1767
        %2201 = vmatpush.bf16.msra.mxu0 %v1759
        %2202 = vmatpush.bf16.msra.mxu0 %v1751
        %2203 = vmatpush.bf16.msra.mxu0 %v1743
        %2204 = vmatpush.bf16.msra.mxu0 %v1735
        %2205 = vmatmul.bf16.gmra.mxu0 %v1127
        %v2206 = vpop.f32.mrf.mxu0
        %v2207 = vadd.f32 %v2168, %v2206
        %v2208 = vpop.f32.mrf.mxu0
        %v2209 = vadd.f32 %v2170, %v2208
        %2210 = vmatmul.bf16.gmra.mxu0 %v1129
        %v2211 = vpop.f32.mrf.mxu0
        %v2212 = vadd.f32 %v2173, %v2211
        %v2213 = vpop.f32.mrf.mxu0
        %v2214 = vadd.f32 %v2175, %v2213
        %2215 = vmatmul.bf16.gmra.mxu0 %v1131
        %v2216 = vpop.f32.mrf.mxu0
        %v2217 = vadd.f32 %v2178, %v2216
        %v2218 = vpop.f32.mrf.mxu0
        %v2219 = vadd.f32 %v2180, %v2218
        %2220 = vmatmul.bf16.gmra.mxu0 %v1133
        %v2221 = vpop.f32.mrf.mxu0
        %v2222 = vadd.f32 %v2183, %v2221
        %v2223 = vpop.f32.mrf.mxu0
        %v2224 = vadd.f32 %v2185, %v2223
        %2225 = vmatmul.bf16.gmra.mxu0 %v1135
        %v2226 = vpop.f32.mrf.mxu0
        %v2227 = vadd.f32 %v2188, %v2226
        %v2228 = vpop.f32.mrf.mxu0
        %v2229 = vadd.f32 %v2190, %v2228
        %2230 = vmatmul.bf16.gmra.mxu0 %v1137
        %v2231 = vpop.f32.mrf.mxu0
        %v2232 = vadd.f32 %v2193, %v2231
        %v2233 = vpop.f32.mrf.mxu0
        %v2234 = vadd.f32 %v2195, %v2233
        %2235 = vdwg.mxu0
        %2236 = vmatpush.bf16.msra.mxu0 %v1728
        %2237 = vmatpush.bf16.msra.mxu0 %v1720
        %2238 = vmatpush.bf16.msra.mxu0 %v1712
        %2239 = vmatpush.bf16.msra.mxu0 %v1704
        %2240 = vmatpush.bf16.msra.mxu0 %v1696
        %2241 = vmatpush.bf16.msra.mxu0 %v1688
        %2242 = vmatpush.bf16.msra.mxu0 %v1680
        %2243 = vmatpush.bf16.msra.mxu0 %v1672
        %2244 = vmatmul.bf16.gmra.mxu0 %v1126
        %v2245 = vpop.f32.mrf.mxu0
        %v2246 = vadd.f32 %v1272, %v2245
        %v2247 = vpop.f32.mrf.mxu0
        %v2248 = vadd.f32 %v1272, %v2247
        %2249 = vmatmul.bf16.gmra.mxu0 %v1128
        %v2250 = vpop.f32.mrf.mxu0
        %v2251 = vadd.f32 %v1272, %v2250
        %v2252 = vpop.f32.mrf.mxu0
        %v2253 = vadd.f32 %v1272, %v2252
        %2254 = vmatmul.bf16.gmra.mxu0 %v1130
        %v2255 = vpop.f32.mrf.mxu0
        %v2256 = vadd.f32 %v1272, %v2255
        %v2257 = vpop.f32.mrf.mxu0
        %v2258 = vadd.f32 %v1272, %v2257
        %2259 = vmatmul.bf16.gmra.mxu0 %v1132
        %v2260 = vpop.f32.mrf.mxu0
        %v2261 = vadd.f32 %v1272, %v2260
        %v2262 = vpop.f32.mrf.mxu0
        %v2263 = vadd.f32 %v1272, %v2262
        %2264 = vmatmul.bf16.gmra.mxu0 %v1134
        %v2265 = vpop.f32.mrf.mxu0
        %v2266 = vadd.f32 %v1272, %v2265
        %v2267 = vpop.f32.mrf.mxu0
        %v2268 = vadd.f32 %v1272, %v2267
        %2269 = vmatmul.bf16.gmra.mxu0 %v1136
        %v2270 = vpop.f32.mrf.mxu0
        %v2271 = vadd.f32 %v1272, %v2270
        %v2272 = vpop.f32.mrf.mxu0
        %v2273 = vadd.f32 %v1272, %v2272
        %2274 = vdwg.mxu0
        %2275 = vmatpush.bf16.msra.mxu0 %v1792
        %2276 = vmatpush.bf16.msra.mxu0 %v1784
        %2277 = vmatpush.bf16.msra.mxu0 %v1776
        %2278 = vmatpush.bf16.msra.mxu0 %v1768
        %2279 = vmatpush.bf16.msra.mxu0 %v1760
        %2280 = vmatpush.bf16.msra.mxu0 %v1752
        %2281 = vmatpush.bf16.msra.mxu0 %v1744
        %2282 = vmatpush.bf16.msra.mxu0 %v1736
        %2283 = vmatmul.bf16.gmra.mxu0 %v1127
        %v2284 = vpop.f32.mrf.mxu0
        %v2285 = vadd.f32 %v2246, %v2284
        %v2286 = vpop.f32.mrf.mxu0
        %v2287 = vadd.f32 %v2248, %v2286
        %2288 = vmatmul.bf16.gmra.mxu0 %v1129
        %v2289 = vpop.f32.mrf.mxu0
        %v2290 = vadd.f32 %v2251, %v2289
        %v2291 = vpop.f32.mrf.mxu0
        %v2292 = vadd.f32 %v2253, %v2291
        %2293 = vmatmul.bf16.gmra.mxu0 %v1131
        %v2294 = vpop.f32.mrf.mxu0
        %v2295 = vadd.f32 %v2256, %v2294
        %v2296 = vpop.f32.mrf.mxu0
        %v2297 = vadd.f32 %v2258, %v2296
        %2298 = vmatmul.bf16.gmra.mxu0 %v1133
        %v2299 = vpop.f32.mrf.mxu0
        %v2300 = vadd.f32 %v2261, %v2299
        %v2301 = vpop.f32.mrf.mxu0
        %v2302 = vadd.f32 %v2263, %v2301
        %2303 = vmatmul.bf16.gmra.mxu0 %v1135
        %v2304 = vpop.f32.mrf.mxu0
        %v2305 = vadd.f32 %v2266, %v2304
        %v2306 = vpop.f32.mrf.mxu0
        %v2307 = vadd.f32 %v2268, %v2306
        %2308 = vmatmul.bf16.gmra.mxu0 %v1137
        %v2309 = vpop.f32.mrf.mxu0
        %v2310 = vadd.f32 %v2271, %v2309
        %v2311 = vpop.f32.mrf.mxu0
        %v2312 = vadd.f32 %v2273, %v2311
        %2313 = vdwg.mxu0
        %2314 = vmatpush.bf16.msra.mxu0 %v1729
        %2315 = vmatpush.bf16.msra.mxu0 %v1721
        %2316 = vmatpush.bf16.msra.mxu0 %v1713
        %2317 = vmatpush.bf16.msra.mxu0 %v1705
        %2318 = vmatpush.bf16.msra.mxu0 %v1697
        %2319 = vmatpush.bf16.msra.mxu0 %v1689
        %2320 = vmatpush.bf16.msra.mxu0 %v1681
        %2321 = vmatpush.bf16.msra.mxu0 %v1673
        %2322 = vmatmul.bf16.gmra.mxu0 %v1126
        %v2323 = vpop.f32.mrf.mxu0
        %v2324 = vadd.f32 %v1273, %v2323
        %v2325 = vpop.f32.mrf.mxu0
        %v2326 = vadd.f32 %v1273, %v2325
        %2327 = vmatmul.bf16.gmra.mxu0 %v1128
        %v2328 = vpop.f32.mrf.mxu0
        %v2329 = vadd.f32 %v1273, %v2328
        %v2330 = vpop.f32.mrf.mxu0
        %v2331 = vadd.f32 %v1273, %v2330
        %2332 = vmatmul.bf16.gmra.mxu0 %v1130
        %v2333 = vpop.f32.mrf.mxu0
        %v2334 = vadd.f32 %v1273, %v2333
        %v2335 = vpop.f32.mrf.mxu0
        %v2336 = vadd.f32 %v1273, %v2335
        %2337 = vmatmul.bf16.gmra.mxu0 %v1132
        %v2338 = vpop.f32.mrf.mxu0
        %v2339 = vadd.f32 %v1273, %v2338
        %v2340 = vpop.f32.mrf.mxu0
        %v2341 = vadd.f32 %v1273, %v2340
        %2342 = vmatmul.bf16.gmra.mxu0 %v1134
        %v2343 = vpop.f32.mrf.mxu0
        %v2344 = vadd.f32 %v1273, %v2343
        %v2345 = vpop.f32.mrf.mxu0
        %v2346 = vadd.f32 %v1273, %v2345
        %2347 = vmatmul.bf16.gmra.mxu0 %v1136
        %v2348 = vpop.f32.mrf.mxu0
        %v2349 = vadd.f32 %v1273, %v2348
        %v2350 = vpop.f32.mrf.mxu0
        %v2351 = vadd.f32 %v1273, %v2350
        %2352 = vdwg.mxu0
        %2353 = vmatpush.bf16.msra.mxu0 %v1793
        %2354 = vmatpush.bf16.msra.mxu0 %v1785
        %2355 = vmatpush.bf16.msra.mxu0 %v1777
        %2356 = vmatpush.bf16.msra.mxu0 %v1769
        %2357 = vmatpush.bf16.msra.mxu0 %v1761
        %2358 = vmatpush.bf16.msra.mxu0 %v1753
        %2359 = vmatpush.bf16.msra.mxu0 %v1745
        %2360 = vmatpush.bf16.msra.mxu0 %v1737
        %2361 = vmatmul.bf16.gmra.mxu0 %v1127
        %v2362 = vpop.f32.mrf.mxu0
        %v2363 = vadd.f32 %v2324, %v2362
        %v2364 = vpop.f32.mrf.mxu0
        %v2365 = vadd.f32 %v2326, %v2364
        %2366 = vmatmul.bf16.gmra.mxu0 %v1129
        %v2367 = vpop.f32.mrf.mxu0
        %v2368 = vadd.f32 %v2329, %v2367
        %v2369 = vpop.f32.mrf.mxu0
        %v2370 = vadd.f32 %v2331, %v2369
        %2371 = vmatmul.bf16.gmra.mxu0 %v1131
        %v2372 = vpop.f32.mrf.mxu0
        %v2373 = vadd.f32 %v2334, %v2372
        %v2374 = vpop.f32.mrf.mxu0
        %v2375 = vadd.f32 %v2336, %v2374
        %2376 = vmatmul.bf16.gmra.mxu0 %v1133
        %v2377 = vpop.f32.mrf.mxu0
        %v2378 = vadd.f32 %v2339, %v2377
        %v2379 = vpop.f32.mrf.mxu0
        %v2380 = vadd.f32 %v2341, %v2379
        %2381 = vmatmul.bf16.gmra.mxu0 %v1135
        %v2382 = vpop.f32.mrf.mxu0
        %v2383 = vadd.f32 %v2344, %v2382
        %v2384 = vpop.f32.mrf.mxu0
        %v2385 = vadd.f32 %v2346, %v2384
        %2386 = vmatmul.bf16.gmra.mxu0 %v1137
        %v2387 = vpop.f32.mrf.mxu0
        %v2388 = vadd.f32 %v2349, %v2387
        %v2389 = vpop.f32.mrf.mxu0
        %v2390 = vadd.f32 %v2351, %v2389
        %2391 = vdwg.mxu0
        %2392 = vmatpush.bf16.msra.mxu0 %v1730
        %2393 = vmatpush.bf16.msra.mxu0 %v1722
        %2394 = vmatpush.bf16.msra.mxu0 %v1714
        %2395 = vmatpush.bf16.msra.mxu0 %v1706
        %2396 = vmatpush.bf16.msra.mxu0 %v1698
        %2397 = vmatpush.bf16.msra.mxu0 %v1690
        %2398 = vmatpush.bf16.msra.mxu0 %v1682
        %2399 = vmatpush.bf16.msra.mxu0 %v1674
        %2400 = vmatmul.bf16.gmra.mxu0 %v1126
        %v2401 = vpop.f32.mrf.mxu0
        %v2402 = vadd.f32 %v1274, %v2401
        %v2403 = vpop.f32.mrf.mxu0
        %v2404 = vadd.f32 %v1274, %v2403
        %2405 = vmatmul.bf16.gmra.mxu0 %v1128
        %v2406 = vpop.f32.mrf.mxu0
        %v2407 = vadd.f32 %v1274, %v2406
        %v2408 = vpop.f32.mrf.mxu0
        %v2409 = vadd.f32 %v1274, %v2408
        %2410 = vmatmul.bf16.gmra.mxu0 %v1130
        %v2411 = vpop.f32.mrf.mxu0
        %v2412 = vadd.f32 %v1274, %v2411
        %v2413 = vpop.f32.mrf.mxu0
        %v2414 = vadd.f32 %v1274, %v2413
        %2415 = vmatmul.bf16.gmra.mxu0 %v1132
        %v2416 = vpop.f32.mrf.mxu0
        %v2417 = vadd.f32 %v1274, %v2416
        %v2418 = vpop.f32.mrf.mxu0
        %v2419 = vadd.f32 %v1274, %v2418
        %2420 = vmatmul.bf16.gmra.mxu0 %v1134
        %v2421 = vpop.f32.mrf.mxu0
        %v2422 = vadd.f32 %v1274, %v2421
        %v2423 = vpop.f32.mrf.mxu0
        %v2424 = vadd.f32 %v1274, %v2423
        %2425 = vmatmul.bf16.gmra.mxu0 %v1136
        %v2426 = vpop.f32.mrf.mxu0
        %v2427 = vadd.f32 %v1274, %v2426
        %v2428 = vpop.f32.mrf.mxu0
        %v2429 = vadd.f32 %v1274, %v2428
        %2430 = vdwg.mxu0
        %2431 = vmatpush.bf16.msra.mxu0 %v1794
        %2432 = vmatpush.bf16.msra.mxu0 %v1786
        %2433 = vmatpush.bf16.msra.mxu0 %v1778
        %2434 = vmatpush.bf16.msra.mxu0 %v1770
        %2435 = vmatpush.bf16.msra.mxu0 %v1762
        %2436 = vmatpush.bf16.msra.mxu0 %v1754
        %2437 = vmatpush.bf16.msra.mxu0 %v1746
        %2438 = vmatpush.bf16.msra.mxu0 %v1738
        %2439 = vmatmul.bf16.gmra.mxu0 %v1127
        %v2440 = vpop.f32.mrf.mxu0
        %v2441 = vadd.f32 %v2402, %v2440
        %v2442 = vpop.f32.mrf.mxu0
        %v2443 = vadd.f32 %v2404, %v2442
        %2444 = vmatmul.bf16.gmra.mxu0 %v1129
        %v2445 = vpop.f32.mrf.mxu0
        %v2446 = vadd.f32 %v2407, %v2445
        %v2447 = vpop.f32.mrf.mxu0
        %v2448 = vadd.f32 %v2409, %v2447
        %2449 = vmatmul.bf16.gmra.mxu0 %v1131
        %v2450 = vpop.f32.mrf.mxu0
        %v2451 = vadd.f32 %v2412, %v2450
        %v2452 = vpop.f32.mrf.mxu0
        %v2453 = vadd.f32 %v2414, %v2452
        %2454 = vmatmul.bf16.gmra.mxu0 %v1133
        %v2455 = vpop.f32.mrf.mxu0
        %v2456 = vadd.f32 %v2417, %v2455
        %v2457 = vpop.f32.mrf.mxu0
        %v2458 = vadd.f32 %v2419, %v2457
        %2459 = vmatmul.bf16.gmra.mxu0 %v1135
        %v2460 = vpop.f32.mrf.mxu0
        %v2461 = vadd.f32 %v2422, %v2460
        %v2462 = vpop.f32.mrf.mxu0
        %v2463 = vadd.f32 %v2424, %v2462
        %2464 = vmatmul.bf16.gmra.mxu0 %v1137
        %v2465 = vpop.f32.mrf.mxu0
        %v2466 = vadd.f32 %v2427, %v2465
        %v2467 = vpop.f32.mrf.mxu0
        %v2468 = vadd.f32 %v2429, %v2467
        %2469 = vdwg.mxu0
        %2470 = vmatpush.bf16.msra.mxu0 %v1731
        %2471 = vmatpush.bf16.msra.mxu0 %v1723
        %2472 = vmatpush.bf16.msra.mxu0 %v1715
        %2473 = vmatpush.bf16.msra.mxu0 %v1707
        %2474 = vmatpush.bf16.msra.mxu0 %v1699
        %2475 = vmatpush.bf16.msra.mxu0 %v1691
        %2476 = vmatpush.bf16.msra.mxu0 %v1683
        %2477 = vmatpush.bf16.msra.mxu0 %v1675
        %2478 = vmatmul.bf16.gmra.mxu0 %v1126
        %v2479 = vpop.f32.mrf.mxu0
        %v2480 = vadd.f32 %v1275, %v2479
        %v2481 = vpop.f32.mrf.mxu0
        %v2482 = vadd.f32 %v1275, %v2481
        %2483 = vmatmul.bf16.gmra.mxu0 %v1128
        %v2484 = vpop.f32.mrf.mxu0
        %v2485 = vadd.f32 %v1275, %v2484
        %v2486 = vpop.f32.mrf.mxu0
        %v2487 = vadd.f32 %v1275, %v2486
        %2488 = vmatmul.bf16.gmra.mxu0 %v1130
        %v2489 = vpop.f32.mrf.mxu0
        %v2490 = vadd.f32 %v1275, %v2489
        %v2491 = vpop.f32.mrf.mxu0
        %v2492 = vadd.f32 %v1275, %v2491
        %2493 = vmatmul.bf16.gmra.mxu0 %v1132
        %v2494 = vpop.f32.mrf.mxu0
        %v2495 = vadd.f32 %v1275, %v2494
        %v2496 = vpop.f32.mrf.mxu0
        %v2497 = vadd.f32 %v1275, %v2496
        %2498 = vmatmul.bf16.gmra.mxu0 %v1134
        %v2499 = vpop.f32.mrf.mxu0
        %v2500 = vadd.f32 %v1275, %v2499
        %v2501 = vpop.f32.mrf.mxu0
        %v2502 = vadd.f32 %v1275, %v2501
        %2503 = vmatmul.bf16.gmra.mxu0 %v1136
        %v2504 = vpop.f32.mrf.mxu0
        %v2505 = vadd.f32 %v1275, %v2504
        %v2506 = vpop.f32.mrf.mxu0
        %v2507 = vadd.f32 %v1275, %v2506
        %2508 = vdwg.mxu0
        %2509 = vmatpush.bf16.msra.mxu0 %v1795
        %2510 = vmatpush.bf16.msra.mxu0 %v1787
        %2511 = vmatpush.bf16.msra.mxu0 %v1779
        %2512 = vmatpush.bf16.msra.mxu0 %v1771
        %2513 = vmatpush.bf16.msra.mxu0 %v1763
        %2514 = vmatpush.bf16.msra.mxu0 %v1755
        %2515 = vmatpush.bf16.msra.mxu0 %v1747
        %2516 = vmatpush.bf16.msra.mxu0 %v1739
        %2517 = vmatmul.bf16.gmra.mxu0 %v1127
        %v2518 = vpop.f32.mrf.mxu0
        %v2519 = vadd.f32 %v2480, %v2518
        %v2520 = vpop.f32.mrf.mxu0
        %v2521 = vadd.f32 %v2482, %v2520
        %2522 = vmatmul.bf16.gmra.mxu0 %v1129
        %v2523 = vpop.f32.mrf.mxu0
        %v2524 = vadd.f32 %v2485, %v2523
        %v2525 = vpop.f32.mrf.mxu0
        %v2526 = vadd.f32 %v2487, %v2525
        %2527 = vmatmul.bf16.gmra.mxu0 %v1131
        %v2528 = vpop.f32.mrf.mxu0
        %v2529 = vadd.f32 %v2490, %v2528
        %v2530 = vpop.f32.mrf.mxu0
        %v2531 = vadd.f32 %v2492, %v2530
        %2532 = vmatmul.bf16.gmra.mxu0 %v1133
        %v2533 = vpop.f32.mrf.mxu0
        %v2534 = vadd.f32 %v2495, %v2533
        %v2535 = vpop.f32.mrf.mxu0
        %v2536 = vadd.f32 %v2497, %v2535
        %2537 = vmatmul.bf16.gmra.mxu0 %v1135
        %v2538 = vpop.f32.mrf.mxu0
        %v2539 = vadd.f32 %v2500, %v2538
        %v2540 = vpop.f32.mrf.mxu0
        %v2541 = vadd.f32 %v2502, %v2540
        %2542 = vmatmul.bf16.gmra.mxu0 %v1137
        %v2543 = vpop.f32.mrf.mxu0
        %v2544 = vadd.f32 %v2505, %v2543
        %v2545 = vpop.f32.mrf.mxu0
        %v2546 = vadd.f32 %v2507, %v2545
        %2547 = vdwg.mxu0
        %2548 = vst [vmem:[%s377] sm:$0xff] %v1973
        %2549 = vst [vmem:[%s377 + $0x8] sm:$0xff] %v2051
        %2550 = vst [vmem:[%s377 + $0x10] sm:$0xff] %v2129
        %2551 = vst [vmem:[%s377 + $0x18] sm:$0xff] %v2207
        %2552 = vst [vmem:[%s377 + $0x20] sm:$0xff] %v2285
        %2553 = vst [vmem:[%s377 + $0x28] sm:$0xff] %v2363
        %2554 = vst [vmem:[%s377 + $0x30] sm:$0xff] %v2441
        %2555 = vst [vmem:[%s377 + $0x38] sm:$0xff] %v2519
        %2556 = vst [vmem:[%s377 + $0x40] sm:$0xff] %v1975
        %2557 = vst [vmem:[%s377 + $0x48] sm:$0xff] %v2053
        %2558 = vst [vmem:[%s377 + $0x50] sm:$0xff] %v2131
        %2559 = vst [vmem:[%s377 + $0x58] sm:$0xff] %v2209
        %2560 = vst [vmem:[%s377 + $0x60] sm:$0xff] %v2287
        %2561 = vst [vmem:[%s377 + $0x68] sm:$0xff] %v2365
        %2562 = vst [vmem:[%s377 + $0x70] sm:$0xff] %v2443
        %2563 = vst [vmem:[%s377 + $0x78] sm:$0xff] %v2521
        %2564 = vst [vmem:[%s377 + $0x80] sm:$0xff] %v1978
        %2565 = vst [vmem:[%s377 + $0x88] sm:$0xff] %v2056
        %2566 = vst [vmem:[%s377 + $0x90] sm:$0xff] %v2134
        %2567 = vst [vmem:[%s377 + $0x98] sm:$0xff] %v2212
        %2568 = vst [vmem:[%s377 + $0xa0] sm:$0xff] %v2290
        %2569 = vst [vmem:[%s377 + $0xa8] sm:$0xff] %v2368
        %2570 = vst [vmem:[%s377 + $0xb0] sm:$0xff] %v2446
        %2571 = vst [vmem:[%s377 + $0xb8] sm:$0xff] %v2524
        %2572 = vst [vmem:[%s377 + $0xc0] sm:$0xff] %v1980
        %2573 = vst [vmem:[%s377 + $0xc8] sm:$0xff] %v2058
        %2574 = vst [vmem:[%s377 + $0xd0] sm:$0xff] %v2136
        %2575 = vst [vmem:[%s377 + $0xd8] sm:$0xff] %v2214
        %2576 = vst [vmem:[%s377 + $0xe0] sm:$0xff] %v2292
        %2577 = vst [vmem:[%s377 + $0xe8] sm:$0xff] %v2370
        %2578 = vst [vmem:[%s377 + $0xf0] sm:$0xff] %v2448
        %2579 = vst [vmem:[%s377 + $0xf8] sm:$0xff] %v2526
        %2580 = vst [vmem:[%s377 + $0x100] sm:$0xff] %v1983
        %2581 = vst [vmem:[%s377 + $0x108] sm:$0xff] %v2061
        %2582 = vst [vmem:[%s377 + $0x110] sm:$0xff] %v2139
        %2583 = vst [vmem:[%s377 + $0x118] sm:$0xff] %v2217
        %2584 = vst [vmem:[%s377 + $0x120] sm:$0xff] %v2295
        %2585 = vst [vmem:[%s377 + $0x128] sm:$0xff] %v2373
        %2586 = vst [vmem:[%s377 + $0x130] sm:$0xff] %v2451
        %2587 = vst [vmem:[%s377 + $0x138] sm:$0xff] %v2529
        %2588 = vst [vmem:[%s377 + $0x140] sm:$0xff] %v1985
        %2589 = vst [vmem:[%s377 + $0x148] sm:$0xff] %v2063
        %2590 = vst [vmem:[%s377 + $0x150] sm:$0xff] %v2141
        %2591 = vst [vmem:[%s377 + $0x158] sm:$0xff] %v2219
        %2592 = vst [vmem:[%s377 + $0x160] sm:$0xff] %v2297
        %2593 = vst [vmem:[%s377 + $0x168] sm:$0xff] %v2375
        %2594 = vst [vmem:[%s377 + $0x170] sm:$0xff] %v2453
        %2595 = vst [vmem:[%s377 + $0x178] sm:$0xff] %v2531
        %2596 = vst [vmem:[%s377 + $0x180] sm:$0xff] %v1988
        %2597 = vst [vmem:[%s377 + $0x188] sm:$0xff] %v2066
        %2598 = vst [vmem:[%s377 + $0x190] sm:$0xff] %v2144
        %2599 = vst [vmem:[%s377 + $0x198] sm:$0xff] %v2222
        %2600 = vst [vmem:[%s377 + $0x1a0] sm:$0xff] %v2300
        %2601 = vst [vmem:[%s377 + $0x1a8] sm:$0xff] %v2378
        %2602 = vst [vmem:[%s377 + $0x1b0] sm:$0xff] %v2456
        %2603 = vst [vmem:[%s377 + $0x1b8] sm:$0xff] %v2534
        %2604 = vst [vmem:[%s377 + $0x1c0] sm:$0xff] %v1990
        %2605 = vst [vmem:[%s377 + $0x1c8] sm:$0xff] %v2068
        %2606 = vst [vmem:[%s377 + $0x1d0] sm:$0xff] %v2146
        %2607 = vst [vmem:[%s377 + $0x1d8] sm:$0xff] %v2224
        %2608 = vst [vmem:[%s377 + $0x1e0] sm:$0xff] %v2302
        %2609 = vst [vmem:[%s377 + $0x1e8] sm:$0xff] %v2380
        %2610 = vst [vmem:[%s377 + $0x1f0] sm:$0xff] %v2458
        %2611 = vst [vmem:[%s377 + $0x1f8] sm:$0xff] %v2536
        %2612 = vst [vmem:[%s377 + $0x200] sm:$0xff] %v1993
        %2613 = vst [vmem:[%s377 + $0x208] sm:$0xff] %v2071
        %2614 = vst [vmem:[%s377 + $0x210] sm:$0xff] %v2149
        %2615 = vst [vmem:[%s377 + $0x218] sm:$0xff] %v2227
        %2616 = vst [vmem:[%s377 + $0x220] sm:$0xff] %v2305
        %2617 = vst [vmem:[%s377 + $0x228] sm:$0xff] %v2383
        %2618 = vst [vmem:[%s377 + $0x230] sm:$0xff] %v2461
        %2619 = vst [vmem:[%s377 + $0x238] sm:$0xff] %v2539
        %2620 = vst [vmem:[%s377 + $0x240] sm:$0xff] %v1995
        %2621 = vst [vmem:[%s377 + $0x248] sm:$0xff] %v2073
        %2622 = vst [vmem:[%s377 + $0x250] sm:$0xff] %v2151
        %2623 = vst [vmem:[%s377 + $0x258] sm:$0xff] %v2229
        %2624 = vst [vmem:[%s377 + $0x260] sm:$0xff] %v2307
        %2625 = vst [vmem:[%s377 + $0x268] sm:$0xff] %v2385
        %2626 = vst [vmem:[%s377 + $0x270] sm:$0xff] %v2463
        %2627 = vst [vmem:[%s377 + $0x278] sm:$0xff] %v2541
        %2628 = vst [vmem:[%s377 + $0x280] sm:$0xff] %v1998
        %2629 = vst [vmem:[%s377 + $0x288] sm:$0xff] %v2076
        %2630 = vst [vmem:[%s377 + $0x290] sm:$0xff] %v2154
        %2631 = vst [vmem:[%s377 + $0x298] sm:$0xff] %v2232
        %2632 = vst [vmem:[%s377 + $0x2a0] sm:$0xff] %v2310
        %2633 = vst [vmem:[%s377 + $0x2a8] sm:$0xff] %v2388
        %2634 = vst [vmem:[%s377 + $0x2b0] sm:$0xff] %v2466
        %2635 = vst [vmem:[%s377 + $0x2b8] sm:$0xff] %v2544
        %2636 = vst [vmem:[%s377 + $0x2c0] sm:$0xff] %v2000
        %2637 = vst [vmem:[%s377 + $0x2c8] sm:$0xff] %v2078
        %2638 = vst [vmem:[%s377 + $0x2d0] sm:$0xff] %v2156
        %2639 = vst [vmem:[%s377 + $0x2d8] sm:$0xff] %v2234
        %2640 = vst [vmem:[%s377 + $0x2e0] sm:$0xff] %v2312
        %2641 = vst [vmem:[%s377 + $0x2e8] sm:$0xff] %v2390
        %2642 = vst [vmem:[%s377 + $0x2f0] sm:$0xff] %v2468
        %2643 = vst [vmem:[%s377 + $0x2f8] sm:$0xff] %v2546
        %s2644 = sand.u32 %s172, 1
        %s2645 = scalar_lea.sflag [#allocation4], %s2644
        %s2646 = sand.u32 %s172, 1
        %s2647 = smul.addr %s2646, 768
        %s2648 = scalar_lea.vmem [#allocation13], %s2647
        // Predicated region
        $region69: #{fused_forward.1} parent=43 // pred_check
          %p2649 = pneg %p182
        $region70: #{fused_forward.1} parent=43 // pred_check_branch
          %2651 = sbr.rel (%p2649) target = $region72
        $region71: #{fused_forward.1} parent=43 // pred_region
          %s2652 = smul.u32 12, %s28
          %2654 = vsyncadd %s2645, 0
          %s2655 = smul.addr %s2652, 8
          %s2656 = smul.addr %s2655, 8
          %s2657 = scalar_lea.hbm %s6, %s2656
          %s2658 = sshll.u32 %s2648, 4
          %s2659 = int_to_ptr.vmem [resolvable:$true] %s2658
          %s2660 = sshll.u32 %s2657, 4
          %s2661 = int_to_ptr.hbm [resolvable:$true] %s2660
          %2666 = dma.vmem_to_hbm [thread:$0]  %s2659, 12288, %s2661, %s2645, 1024, 1024, 64
        $region72: #{fused_forward.1} parent=43 // pred_fallthru
          _
      $region44: #{fused_forward.1} parent=5 // pred_fallthru
        _
      %p2667 = scmp.le.s32.totalorder 2, %s23
      // Predicated region
      $region73: #{fused_forward.1} parent=5 // pred_check
        %p2668 = pneg %p2667
      $region74: #{fused_forward.1} parent=5 // pred_check_branch
        %2670 = sbr.rel (%p2668) target = $region76
      $region75: #{fused_forward.1} parent=5 // pred_region
        %s2671 = ssub.s32 %s23, 2
        // Predicated region
        $region77: #{fused_forward.1} parent=75 // pred_check
          %p2672 = pneg %p188
        $region78: #{fused_forward.1} parent=75 // pred_check_branch
          %2674 = sbr.rel (%p2672) target = $region80
        $region79: #{fused_forward.1} parent=75 // pred_region
          %s2675 = sand.u32 %s173, 1
          %s2676 = scalar_lea.sflag [#allocation4], %s2675
          %s2677 = sand.u32 %s173, 1
          %s2678 = smul.addr %s2677, 768
          %s2679 = scalar_lea.vmem [#allocation13], %s2678
          %2681 = dma.done %s2676, 12288
        $region80: #{fused_forward.1} parent=75 // pred_fallthru
          _
      $region76: #{fused_forward.1} parent=5 // pred_fallthru
        _
    $region6: #{fused_forward.1} parent=1 // loop_footer
      %s27 = sadd.s32 1, %s23
    $region7: #{fused_forward.1} parent=1 // loop_footer_branch
      %22 = sbr.rel target = $region3
    $region8: #{fused_forward.1} parent=1 // loop_exit
      _
    %2682 = vsyncpa [#allocation3], 1
    %s2683 = scalar_lea.sflag [#allocation3], 1
    %2684 = vsyncpa %s2683, 1
    %2685 = vsyncpa [#allocation6], 1
    %s2686 = scalar_lea.sflag [#allocation6], 1
    %2687 = vsyncpa %s2686, 1
    %2688 = vsyncpa [#allocation9], 1
    %2689 = vsyncpa [#allocation12], 1
    %2690 = vsyncpa [#allocation4], 1
    %s2691 = scalar_lea.sflag [#allocation4], 1
    %2692 = vsyncpa %s2691, 1

</llo_original>
